<compile_context>
chip_gen: v7x
topology: tpu7x:2x2x1
jax: 0.10.0
libtpu: 0.0.40
codegen_flags: <defaults>
</compile_context>

<pallas_src>
import functools
import math

import jax
import jax.numpy as jnp
from jax.experimental import pallas as pl
from jax.experimental.pallas import tpu as pltpu


# ----------------------------------------------------------------------------- helpers

def _round_up(v, m):
    return ((v + m - 1) // m) * m


def _choose_f_chunk(F, block_f):
    """Largest multiple of 128 that divides F and is <= block_f, else F."""
    if F % 128 == 0:
        cap = max(128, min(block_f - block_f % 128, F))
        for cand in range(cap, 127, -128):
            if F % cand == 0:
                return cand
    return F


def _act_dtype_for_backend():
    """bf16 bias/ReLU on chips with a bf16 VPU (v6e/v7x); f32 elsewhere (v5e)."""
    try:
        kind = jax.devices()[0].device_kind.lower()
    except Exception:
        return jnp.float32
    if ("v6" in kind) or ("v7" in kind):
        return jnp.bfloat16
    return jnp.float32


def _vmem_cap_bytes():
    try:
        return int(pltpu.get_tpu_info().vmem_capacity_bytes)
    except Exception:
        return 64 * 1024 * 1024          # v7x-safe fallback


# ----------------------------------------------------------------------------- kernels

def _ffn_chunk(x, w1_ref, b1_ref, w2_ref, compute_dtype, act_dtype):
    # x: [bm, E] (input dtype); w1_ref: [E, tf]; b1_ref: [1, tf]; w2_ref: [tf, E]
    h = jnp.dot(x.astype(compute_dtype), w1_ref[...],
                preferred_element_type=jnp.float32)            # [bm, tf] f32
    h = h.astype(act_dtype) + b1_ref[...].astype(act_dtype)    # bias in act dtype
    h = jnp.maximum(h, 0).astype(compute_dtype)                # ReLU, cast for MXU
    return jnp.dot(h, w2_ref[...],
                   preferred_element_type=jnp.float32)          # [bm, E] f32


def _ffn_kernel_self(x_ref, w1_ref, b1_ref, w2_ref, b2_ref, o_ref, acc_ref,
                     *, compute_dtype, act_dtype, add_identity):
    k = pl.program_id(1)
    x = x_ref[...]

    @pl.when(k == 0)
    def _():
        acc_ref[...] = jnp.zeros_like(acc_ref)

    acc_ref[...] += _ffn_chunk(x, w1_ref, b1_ref, w2_ref,
                               compute_dtype, act_dtype)

    @pl.when(k == pl.num_programs(1) - 1)
    def _():
        y = acc_ref[...] + b2_ref[...].astype(jnp.float32)
        if add_identity:
            y = y + x.astype(jnp.float32)
        o_ref[...] = y.astype(o_ref.dtype)


def _ffn_kernel_ext(x_ref, res_ref, w1_ref, b1_ref, w2_ref, b2_ref, o_ref,
                    acc_ref, *, compute_dtype, act_dtype):
    k = pl.program_id(1)
    x = x_ref[...]

    @pl.when(k == 0)
    def _():
        acc_ref[...] = jnp.zeros_like(acc_ref)

    acc_ref[...] += _ffn_chunk(x, w1_ref, b1_ref, w2_ref,
                               compute_dtype, act_dtype)

    @pl.when(k == pl.num_programs(1) - 1)
    def _():
        y = acc_ref[...] + b2_ref[...].astype(jnp.float32)
        y = y + res_ref[...].astype(jnp.float32)
        o_ref[...] = y.astype(o_ref.dtype)


# ----------------------------------------------------------------------------- wrapper

def ffn_forward(x, w1, b1, w2, b2, *, identity=None, add_identity=True,
                block_m=512, block_f=512, compute_dtype=jnp.bfloat16,
                act_dtype=None):
    """Fused FFN forward.

    x:  [..., E]   (leading dims flattened to rows)
    w1: [E, F], b1: [F]      first Linear  (weight stored as [in, out])
    w2: [F, E], b2: [E]      second Linear
    identity: optional residual tensor, same shape as x.
    Returns an array with the same shape/dtype as x.
    """
    orig_shape = x.shape
    E = orig_shape[-1]
    F = w1.shape[1]
    assert w1.shape == (E, F) and w2.shape == (F, E)
    assert b1.shape == (F,) and b2.shape == (E,)

    if act_dtype is None:
        act_dtype = _act_dtype_for_backend()

    x2 = x.reshape(-1, E)
    M = x2.shape[0]

    # Row tile from an integer grid count: >=2 steps when M allows (so the
    # "parallel" row axis shards over v7x's two TCs) with minimal tail padding.
    if M <= 8:
        g = 1
    else:
        g = max(2, -(-M // block_m))
    bm = _round_up(-(-M // g), 8)
    Mp = _round_up(M, bm)
    if Mp != M:
        x2 = jnp.pad(x2, ((0, Mp - M), (0, 0)))

    tf = _choose_f_chunk(F, block_f)

    # Weights in compute dtype (bf16) -> half the DMA / VMEM bytes per slab.
    w1c = w1.astype(compute_dtype)
    w2c = w2.astype(compute_dtype)
    b1r = b1.reshape(1, F).astype(jnp.float32)
    b2r = b2.reshape(1, E).astype(jnp.float32)

    n_row_blocks = Mp // bm
    n_f_blocks = F // tf
    grid = (n_row_blocks, n_f_blocks)

    row_spec = pl.BlockSpec((bm, E), lambda i, k: (i, 0))
    w1_spec = pl.BlockSpec((E, tf), lambda i, k: (0, k))
    b1_spec = pl.BlockSpec((1, tf), lambda i, k: (0, k))
    w2_spec = pl.BlockSpec((tf, E), lambda i, k: (k, 0))
    b2_spec = pl.BlockSpec((1, E), lambda i, k: (0, 0))

    use_ext = add_identity and (identity is not None)

    xb = jnp.dtype(x.dtype).itemsize
    cdb = jnp.dtype(compute_dtype).itemsize

    # VMEM budget: double-buffered streamed blocks + accumulator + headroom,
    # capped at 75% of the device's physical VMEM (64 MiB on v7x).
    need = (2 * bm * E * xb                               # x tiles
            + (2 * bm * E * xb if use_ext else 0)         # residual tiles
            + 2 * E * tf * cdb + 2 * tf * 4               # w1 slab + b1
            + 2 * tf * E * cdb + 2 * E * 4                # w2 slab + b2
            + 2 * bm * E * xb                             # output tiles
            + bm * E * 4                                  # f32 accumulator
            + bm * tf * 4)                                # hidden-chunk headroom
    vmem_limit = max(int(need * 1.5) + (4 << 20), 16 << 20)
    vmem_limit = min(vmem_limit, _vmem_cap_bytes() * 3 // 4)

    cparams = pltpu.CompilerParams(
        dimension_semantics=("parallel", "arbitrary"),
        vmem_limit_bytes=vmem_limit,
    )

    cost = pl.CostEstimate(
        flops=4 * Mp * E * F,
        transcendentals=0,
        bytes_accessed=(Mp * E * xb * (3 if use_ext else 2)
                        + n_row_blocks * (2 * E * F * cdb + (F + E) * 4)),
    )

    scratch = [pltpu.VMEM((bm, E), jnp.float32)]

    if use_ext:
        id2 = identity.reshape(-1, E)
        if Mp != M:
            id2 = jnp.pad(id2, ((0, Mp - M), (0, 0)))
        kernel = functools.partial(_ffn_kernel_ext,
                                   compute_dtype=compute_dtype,
                                   act_dtype=act_dtype)
        out = pl.pallas_call(
            kernel,
            out_shape=jax.ShapeDtypeStruct((Mp, E), x.dtype),
            grid_spec=pltpu.PrefetchScalarGridSpec(
                num_scalar_prefetch=0,
                grid=grid,
                in_specs=[row_spec, row_spec, w1_spec, b1_spec, w2_spec,
                          b2_spec],
                out_specs=row_spec,
                scratch_shapes=scratch),
            compiler_params=cparams,
            cost_estimate=cost,
        )(x2, id2, w1c, b1r, w2c, b2r)
    else:
        kernel = functools.partial(_ffn_kernel_self,
                                   compute_dtype=compute_dtype,
                                   act_dtype=act_dtype,
                                   add_identity=add_identity)
        out = pl.pallas_call(
            kernel,
            out_shape=jax.ShapeDtypeStruct((Mp, E), x.dtype),
            grid_spec=pltpu.PrefetchScalarGridSpec(
                num_scalar_prefetch=0,
                grid=grid,
                in_specs=[row_spec, w1_spec, b1_spec, w2_spec, b2_spec],
                out_specs=row_spec,
                scratch_shapes=scratch),
            compiler_params=cparams,
            cost_estimate=cost,
        )(x2, w1c, b1r, w2c, b2r)

    if Mp != M:
        out = out[:M]
    return out.reshape(orig_shape)


# ----------------------------------------------------------------------------- params

def xavier_uniform(key, fan_in, fan_out):
    bound = math.sqrt(6.0 / (fan_in + fan_out))
    # stored as [in, out] (transposed relative to torch nn.Linear.weight)
    return jax.random.uniform(key, (fan_in, fan_out), jnp.float32, -bound, bound)


def make_ffn_params(key, embed_dims, feedforward_channels):
    k1, k2 = jax.random.split(key, 2)
    return dict(
        w1=xavier_uniform(k1, embed_dims, feedforward_channels),
        b1=jnp.zeros((feedforward_channels,), jnp.float32),
        w2=xavier_uniform(k2, feedforward_channels, embed_dims),
        b2=jnp.zeros((embed_dims,), jnp.float32),
    )


# ----------------------------------------------------------------------------- main

if __name__ == "__main__":
    embed_dims = 256
    feedforward_channels = 1024
    batch = 2
    seq = 128                      # M = 256 rows -> 2 row blocks x 2 F chunks

    root = jax.random.PRNGKey(0)
    kp, kx = jax.random.split(root, 2)
    params = make_ffn_params(kp, embed_dims, feedforward_channels)

    x = jax.random.normal(kx, (batch, seq, embed_dims), jnp.float32)

    fwd = jax.jit(functools.partial(
        ffn_forward,
        add_identity=True,
        block_m=512,
        block_f=512,
        compute_dtype=jnp.bfloat16,
    ))
    out = fwd(x, params["w1"], params["b1"], params["w2"], params["b2"])
    out = jax.block_until_ready(out)

    # Pure-JAX f32 reference (dropout p=0.0 is identity).
    h_ref = jnp.maximum(x @ params["w1"] + params["b1"], 0.0)
    ref = x + (h_ref @ params["w2"] + params["b2"])

    assert out.shape == x.shape
    assert bool(jnp.all(jnp.isfinite(out)))
    max_err = float(jnp.max(jnp.abs(out - ref)))
    max_ref = float(jnp.max(jnp.abs(ref)))
    # Generous tolerance: matmul inputs are bf16 (f32 accumulation).
    assert max_err < 0.1 * (1.0 + max_ref), (max_err, max_ref)

    print("KERNEL_OK")
</pallas_src>

<mosaic_0001>
module attributes {stable_mosaic.version = 11 : i64} {
  func.func @_ffn_kernel_self(%arg0: i32, %arg1: i32, %arg2: memref<128x256xf32, #tpu.memory_space<vmem>>, %arg3: memref<256x512xbf16, #tpu.memory_space<vmem>>, %arg4: memref<1x512xf32, #tpu.memory_space<vmem>>, %arg5: memref<512x256xbf16, #tpu.memory_space<vmem>>, %arg6: memref<1x256xf32, #tpu.memory_space<vmem>>, %arg7: memref<128x256xf32, #tpu.memory_space<vmem>>, %arg8: memref<128x256xf32, #tpu.memory_space<vmem>>) attributes {dimension_semantics = [#tpu.dimension_semantics<parallel>, #tpu.dimension_semantics<arbitrary>], iteration_bounds = array<i64: 2, 2>, scalar_prefetch = 0 : i64, scratch_operands = 1 : i64, tpu.core_type = #tpu.core_type<tc>, window_params = [{transform_indices = @transform_0, window_bounds = array<i64: 128, 256>}, {transform_indices = @transform_1, window_bounds = array<i64: 256, 512>}, {transform_indices = @transform_2, window_bounds = array<i64: 1, 512>}, {transform_indices = @transform_3, window_bounds = array<i64: 512, 256>}, {pipeline_mode = #tpu.pipeline_mode<synchronous>, transform_indices = @transform_4, window_bounds = array<i64: 1, 256>}, {transform_indices = @transform_5, window_bounds = array<i64: 128, 256>}]} {
    %c0 = arith.constant 0 : index
    %c0_0 = arith.constant 0 : index
    %0 = vector.load %arg2[%c0, %c0_0] : memref<128x256xf32, #tpu.memory_space<vmem>>, vector<128x256xf32>
    %c0_i32 = arith.constant 0 : i32
    %1 = arith.cmpi eq, %arg1, %c0_i32 : i32
    %2 = arith.extui %1 : i1 to i32
    %c0_i32_1 = arith.constant 0 : i32
    %3 = arith.cmpi ne, %2, %c0_i32_1 : i32
    scf.if %3 {
      %cst_15 = arith.constant 0.000000e+00 : f32
      %21 = vector.broadcast %cst_15 : f32 to vector<128x256xf32>
      %c0_16 = arith.constant 0 : index
      %c0_17 = arith.constant 0 : index
      %22 = vector.load %arg8[%c0_16, %c0_17] : memref<128x256xf32, #tpu.memory_space<vmem>>, vector<128x256xf32>
      tpu.vector_store %arg8[%c0_16, %c0_17], %21 {strides = array<i32>} : memref<128x256xf32, #tpu.memory_space<vmem>>, vector<128x256xf32>,
    } else {
    }
    %c0_2 = arith.constant 0 : index
    %c0_3 = arith.constant 0 : index
    %4 = vector.load %arg8[%c0_2, %c0_3] : memref<128x256xf32, #tpu.memory_space<vmem>>, vector<128x256xf32>
    %5 = arith.truncf %0 : vector<128x256xf32> to vector<128x256xbf16>
    %c0_4 = arith.constant 0 : index
    %c0_5 = arith.constant 0 : index
    %6 = vector.load %arg3[%c0_4, %c0_5] : memref<256x512xbf16, #tpu.memory_space<vmem>>, vector<256x512xbf16>
    %cst = arith.constant dense<0.000000e+00> : vector<128x512xf32>
    %7 = tpu.matmul %5, %6, %cst {dimension_numbers = #tpu.dot_dimension_numbers<[1], [0], [0], [1], [0, 0, 1, 1], [], []>} : vector<128x256xbf16>, vector<256x512xbf16>, vector<128x512xf32> -> vector<128x512xf32>
    %c0_6 = arith.constant 0 : index
    %c0_7 = arith.constant 0 : index
    %8 = vector.load %arg4[%c0_6, %c0_7] : memref<1x512xf32, #tpu.memory_space<vmem>>, vector<1x512xf32>
    %9 = vector.broadcast %8 : vector<1x512xf32> to vector<128x512xf32>
    %10 = arith.addf %7, %9 : vector<128x512xf32>
    %cst_8 = arith.constant 0.000000e+00 : f32
    %11 = vector.broadcast %cst_8 : f32 to vector<128x512xf32>
    %12 = arith.maximumf %10, %11 : vector<128x512xf32>
    %13 = arith.truncf %12 : vector<128x512xf32> to vector<128x512xbf16>
    %c0_9 = arith.constant 0 : index
    %c0_10 = arith.constant 0 : index
    %14 = vector.load %arg5[%c0_9, %c0_10] : memref<512x256xbf16, #tpu.memory_space<vmem>>, vector<512x256xbf16>
    %cst_11 = arith.constant dense<0.000000e+00> : vector<128x256xf32>
    %15 = tpu.matmul %13, %14, %cst_11 {dimension_numbers = #tpu.dot_dimension_numbers<[1], [0], [0], [1], [0, 0, 1, 1], [], []>} : vector<128x512xbf16>, vector<512x256xbf16>, vector<128x256xf32> -> vector<128x256xf32>
    %16 = arith.addf %4, %15 : vector<128x256xf32>
    %c0_12 = arith.constant 0 : index
    %c0_13 = arith.constant 0 : index
    %17 = vector.load %arg8[%c0_12, %c0_13] : memref<128x256xf32, #tpu.memory_space<vmem>>, vector<128x256xf32>
    tpu.vector_store %arg8[%c0_12, %c0_13], %16 {strides = array<i32>} : memref<128x256xf32, #tpu.memory_space<vmem>>, vector<128x256xf32>,
    %c1_i32 = arith.constant 1 : i32
    %18 = arith.cmpi eq, %arg1, %c1_i32 : i32
    %19 = arith.extui %18 : i1 to i32
    %c0_i32_14 = arith.constant 0 : i32
    %20 = arith.cmpi ne, %19, %c0_i32_14 : i32
    scf.if %20 {
      %c0_15 = arith.constant 0 : index
      %c0_16 = arith.constant 0 : index
      %21 = vector.load %arg8[%c0_15, %c0_16] : memref<128x256xf32, #tpu.memory_space<vmem>>, vector<128x256xf32>
      %c0_17 = arith.constant 0 : index
      %c0_18 = arith.constant 0 : index
      %22 = vector.load %arg6[%c0_17, %c0_18] : memref<1x256xf32, #tpu.memory_space<vmem>>, vector<1x256xf32>
      %23 = vector.broadcast %22 : vector<1x256xf32> to vector<128x256xf32>
      %24 = arith.addf %21, %23 : vector<128x256xf32>
      %25 = arith.addf %24, %0 : vector<128x256xf32>
      %c0_19 = arith.constant 0 : index
      %c0_20 = arith.constant 0 : index
      %26 = vector.load %arg7[%c0_19, %c0_20] : memref<128x256xf32, #tpu.memory_space<vmem>>, vector<128x256xf32>
      tpu.vector_store %arg7[%c0_19, %c0_20], %25 {strides = array<i32>} : memref<128x256xf32, #tpu.memory_space<vmem>>, vector<128x256xf32>,
    } else {
    }
    return
  }
  func.func @transform_0(%arg0: i32, %arg1: i32) -> (i32, i32) {
    %c0_i32 = arith.constant 0 : i32
    %c0_i32_0 = arith.constant 0 : i32
    return %arg0, %c0_i32 : i32, i32
  }
  func.func @transform_1(%arg0: i32, %arg1: i32) -> (i32, i32) {
    %c0_i32 = arith.constant 0 : i32
    %c0_i32_0 = arith.constant 0 : i32
    return %c0_i32, %arg1 : i32, i32
  }
  func.func @transform_2(%arg0: i32, %arg1: i32) -> (i32, i32) {
    %c0_i32 = arith.constant 0 : i32
    %c0_i32_0 = arith.constant 0 : i32
    return %c0_i32, %arg1 : i32, i32
  }
  func.func @transform_3(%arg0: i32, %arg1: i32) -> (i32, i32) {
    %c0_i32 = arith.constant 0 : i32
    %c0_i32_0 = arith.constant 0 : i32
    return %arg1, %c0_i32 : i32, i32
  }
  func.func @transform_4(%arg0: i32, %arg1: i32) -> (i32, i32) {
    %c0_i32 = arith.constant 0 : i32
    %c0_i32_0 = arith.constant 0 : i32
    %c0_i32_1 = arith.constant 0 : i32
    return %c0_i32, %c0_i32_0 : i32, i32
  }
  func.func @transform_5(%arg0: i32, %arg1: i32) -> (i32, i32) {
    %c0_i32 = arith.constant 0 : i32
    %c0_i32_0 = arith.constant 0 : i32
    return %arg0, %c0_i32 : i32, i32
  }
}

</mosaic_0001>

<llo_original>
// kernel: ffn_forward.1
$region0: #{ffn_forward.1}
  #allocation0 [shape = 'u32[]', space=smem, size = 0x4, offset = 0x4, fixed_abs, tag = 'smem constant byte address 0x4 - core index']
  #allocation1 [shape = 'u32[144,128]{1,0:T(1,128)}', space=vmem, size = 0x12000, scoped, tag = 'internal scratch']
  #allocation2 [shape = 'f32[128,256]{1,0:T(8,128)}', space=vmem, size = 0x20000, scoped, tag = 'scratch operand']
  %s0 = inlined_call_operand.vmem [shape: f32[256,256], index: 0, kind: input, shape index: {}]
  %s1 = inlined_call_operand.vmem [shape: bf16[256,1024], index: 1, kind: input, shape index: {}]
  %s2 = inlined_call_operand.vmem [shape: f32[1,1024], index: 2, kind: input, shape index: {}]
  %s3 = inlined_call_operand.vmem [shape: bf16[1024,256], index: 3, kind: input, shape index: {}]
  %s4 = inlined_call_operand.vmem [shape: f32[1,256], index: 4, kind: input, shape index: {}]
  %s5 = inlined_call_operand.hbm [shape: f32[256,256], index: 5, kind: output, shape index: {}]
  %s6 = sld [smem:[#allocation0]]
  $region84: #{ffn_forward.1} parent=0
    _
  %s8 = ssub.s32 1, %s6
  %s9 = scalar_select 0, %s8, %s6
  $region1: #{ffn_forward.1} parent=0
    #allocation3 [shape = 'u8[524288]{0}', space=vmem, size = 0x80000, scoped, tag = 'input window, operand 1']
    #allocation4 [shape = 'u8[262144]{0}', space=vmem, size = 0x40000, scoped, tag = 'output window, operand 0']
    #allocation5 [shape = 's32[2]{0}', space=sflag, size = 0x8, scoped, tag = 'scoped memory for ffn_forward.1']
    %10 = vsyncpa [#allocation5], 0
    %s11 = scalar_lea.sflag [#allocation5], 1
    %12 = vsyncpa %s11, 0
    loop: start=0, step=1, limit=6
    $region2: #{ffn_forward.1} parent=1 // loop_pre_header
      _
    $region3: #{ffn_forward.1} parent=1 // loop_header
      %s14 = sphi 0, %s18
      %p15 = scmp.ge.s32.totalorder %s14, 6
      %s21 = sphi 0, %s33
      %s22 = sphi 0, %s29
      %s23 = sphi 0, %s21
      %s24 = sphi 0, %s22
      %s25 = sphi 0, %s23
      %s26 = sphi 0, %s24
      %s36 = sphi 0, %s38
      %s39 = sphi 0, %s36
      %s40 = sphi 0, %s39
      %s56 = sphi 0, %s40
      %s62 = sphi 0, %s64
      %s65 = sphi 0, %s62
      %s66 = sphi 0, %s65
      %s82 = sphi 0, %s66
      %s88 = sphi 0, %s90
      %s91 = sphi 0, %s88
      %s92 = sphi 0, %s91
      %s108 = sphi 0, %s92
      %s114 = sphi 0, %s116
      %s117 = sphi 0, %s114
      %s118 = sphi 0, %s117
      %s134 = sphi 0, %s118
      %s138 = sphi 0, %s138
      %s140 = sphi 0, %s138
      %s141 = sphi 0, %s140
      %s155 = sphi 0, %s141
      %s161 = sphi 0, %s163
      %s164 = sphi 0, %s161
      %s165 = sphi 0, %s164
      %s181 = sphi 0, %s165
    $region4: #{ffn_forward.1} parent=1 // loop_header_branch
      %17 = sbr.rel (%p15) target = $region8
    $region5: #{ffn_forward.1} parent=1 // loop_body
      %s19 = ssub.s32 %s14, 1
      %s20 = ssub.s32 %s14, 2
      %s27 = sadd.s32 1, %s22
      %p28 = scmp.ge.s32.totalorder %s27, 2
      %s29 = scalar_select %p28, 0, %s27
      %s30 = sadd.s32 1, %s21
      %s31 = scalar_select %p28, %s30, %s21
      %p32 = scmp.ge.s32.totalorder %s31, 2
      %s33 = scalar_select %p32, 0, %s31
      %s34 = ssub.s32 %s21, %s33
      %p35 = scmp.eq.s32.totalorder %s34, 0
      %s37 = sadd.s32 %s36, 1
      %s38 = scalar_select %p35, %s36, %s37
      %p41 = pneg %p35
      %p42 = scmp.eq.s32.totalorder %s14, 3
      %p43 = por %p41, %p42
      %p44 = scmp.ne.s32.totalorder %s36, %s39
      %p45 = scmp.eq.s32.totalorder %s14, 0
      %p46 = por %p44, %p45
      %p47 = scmp.ne.s32.totalorder %s36, %s39
      %p48 = scmp.eq.s32.totalorder %s19, 3
      %p49 = por %p47, %p48
      %p50 = scmp.ne.s32.totalorder %s39, %s40
      %p51 = scmp.eq.s32.totalorder %s19, 0
      %p52 = por %p50, %p51
      %p53 = scmp.ne.s32.totalorder %s39, %s40
      %p54 = scmp.eq.s32.totalorder %s20, 3
      %p55 = por %p53, %p54
      %p57 = scmp.ne.s32.totalorder %s40, %s56
      %p58 = scmp.eq.s32.totalorder %s20, 0
      %p59 = por %p57, %p58
      %s60 = ssub.s32 %s22, %s29
      %p61 = scmp.eq.s32.totalorder %s60, 0
      %s63 = sadd.s32 %s62, 1
      %s64 = scalar_select %p61, %s62, %s63
      %p67 = pneg %p61
      %p68 = scmp.eq.s32.totalorder %s14, 3
      %p69 = por %p67, %p68
      %p70 = scmp.ne.s32.totalorder %s62, %s65
      %p71 = scmp.eq.s32.totalorder %s14, 0
      %p72 = por %p70, %p71
      %p73 = scmp.ne.s32.totalorder %s62, %s65
      %p74 = scmp.eq.s32.totalorder %s19, 3
      %p75 = por %p73, %p74
      %p76 = scmp.ne.s32.totalorder %s65, %s66
      %p77 = scmp.eq.s32.totalorder %s19, 0
      %p78 = por %p76, %p77
      %p79 = scmp.ne.s32.totalorder %s65, %s66
      %p80 = scmp.eq.s32.totalorder %s20, 3
      %p81 = por %p79, %p80
      %p83 = scmp.ne.s32.totalorder %s66, %s82
      %p84 = scmp.eq.s32.totalorder %s20, 0
      %p85 = por %p83, %p84
      %s86 = ssub.s32 %s22, %s29
      %p87 = scmp.eq.s32.totalorder %s86, 0
      %s89 = sadd.s32 %s88, 1
      %s90 = scalar_select %p87, %s88, %s89
      %p93 = pneg %p87
      %p94 = scmp.eq.s32.totalorder %s14, 3
      %p95 = por %p93, %p94
      %p96 = scmp.ne.s32.totalorder %s88, %s91
      %p97 = scmp.eq.s32.totalorder %s14, 0
      %p98 = por %p96, %p97
      %p99 = scmp.ne.s32.totalorder %s88, %s91
      %p100 = scmp.eq.s32.totalorder %s19, 3
      %p101 = por %p99, %p100
      %p102 = scmp.ne.s32.totalorder %s91, %s92
      %p103 = scmp.eq.s32.totalorder %s19, 0
      %p104 = por %p102, %p103
      %p105 = scmp.ne.s32.totalorder %s91, %s92
      %p106 = scmp.eq.s32.totalorder %s20, 3
      %p107 = por %p105, %p106
      %p109 = scmp.ne.s32.totalorder %s92, %s108
      %p110 = scmp.eq.s32.totalorder %s20, 0
      %p111 = por %p109, %p110
      %s112 = ssub.s32 %s22, %s29
      %p113 = scmp.eq.s32.totalorder %s112, 0
      %s115 = sadd.s32 %s114, 1
      %s116 = scalar_select %p113, %s114, %s115
      %p119 = pneg %p113
      %p120 = scmp.eq.s32.totalorder %s14, 3
      %p121 = por %p119, %p120
      %p122 = scmp.ne.s32.totalorder %s114, %s117
      %p123 = scmp.eq.s32.totalorder %s14, 0
      %p124 = por %p122, %p123
      %p125 = scmp.ne.s32.totalorder %s114, %s117
      %p126 = scmp.eq.s32.totalorder %s19, 3
      %p127 = por %p125, %p126
      %p128 = scmp.ne.s32.totalorder %s117, %s118
      %p129 = scmp.eq.s32.totalorder %s19, 0
      %p130 = por %p128, %p129
      %p131 = scmp.ne.s32.totalorder %s117, %s118
      %p132 = scmp.eq.s32.totalorder %s20, 3
      %p133 = por %p131, %p132
      %p135 = scmp.ne.s32.totalorder %s118, %s134
      %p136 = scmp.eq.s32.totalorder %s20, 0
      %p137 = por %p135, %p136
      %s139 = sadd.s32 %s138, 1
      %p142 = scmp.eq.s32.totalorder %s14, 3
      %p143 = scmp.ne.s32.totalorder %s138, %s140
      %p144 = scmp.eq.s32.totalorder %s14, 0
      %p145 = por %p143, %p144
      %p146 = scmp.ne.s32.totalorder %s138, %s140
      %p147 = scmp.eq.s32.totalorder %s19, 3
      %p148 = por %p146, %p147
      %p149 = scmp.ne.s32.totalorder %s140, %s141
      %p150 = scmp.eq.s32.totalorder %s19, 0
      %p151 = por %p149, %p150
      %p152 = scmp.ne.s32.totalorder %s140, %s141
      %p153 = scmp.eq.s32.totalorder %s20, 3
      %p154 = por %p152, %p153
      %p156 = scmp.ne.s32.totalorder %s141, %s155
      %p157 = scmp.eq.s32.totalorder %s20, 0
      %p158 = por %p156, %p157
      %s159 = ssub.s32 %s21, %s33
      %p160 = scmp.eq.s32.totalorder %s159, 0
      %s162 = sadd.s32 %s161, 1
      %s163 = scalar_select %p160, %s161, %s162
      %p166 = pneg %p160
      %p167 = scmp.eq.s32.totalorder %s14, 3
      %p168 = por %p166, %p167
      %p169 = scmp.ne.s32.totalorder %s161, %s164
      %p170 = scmp.eq.s32.totalorder %s14, 0
      %p171 = por %p169, %p170
      %p172 = scmp.ne.s32.totalorder %s161, %s164
      %p173 = scmp.eq.s32.totalorder %s19, 3
      %p174 = por %p172, %p173
      %p175 = scmp.ne.s32.totalorder %s164, %s165
      %p176 = scmp.eq.s32.totalorder %s19, 0
      %p177 = por %p175, %p176
      %p178 = scmp.ne.s32.totalorder %s164, %s165
      %p179 = scmp.eq.s32.totalorder %s20, 3
      %p180 = por %p178, %p179
      %p182 = scmp.ne.s32.totalorder %s165, %s181
      %p183 = scmp.eq.s32.totalorder %s20, 0
      %p184 = por %p182, %p183
      %p185 = scmp.le.s32.totalorder 1, %s14
      %p186 = scmp.lt.s32.totalorder %s14, 5
      %p187 = pnand %p185, %p186
      %p188 = pneg %p187
      // Predicated region
      $region9: #{ffn_forward.1} parent=5 // pred_check
        _
      $region10: #{ffn_forward.1} parent=5 // pred_check_branch
        %190 = sbr.rel (%p187) target = $region12
      $region11: #{ffn_forward.1} parent=5 // pred_region
        %s191 = ssub.s32 %s14, 1
        // Predicated region
        $region13: #{ffn_forward.1} parent=11 // pred_check
          %p192 = pneg %p151
        $region14: #{ffn_forward.1} parent=11 // pred_check_branch
          %194 = sbr.rel (%p192) target = $region16
        $region15: #{ffn_forward.1} parent=11 // pred_region
          _
        $region16: #{ffn_forward.1} parent=11 // pred_fallthru
          _
      $region12: #{ffn_forward.1} parent=5 // pred_fallthru
        _
      %p195 = scmp.lt.s32.totalorder %s14, 4
      // Predicated region
      $region17: #{ffn_forward.1} parent=5 // pred_check
        %p196 = pneg %p195
      $region18: #{ffn_forward.1} parent=5 // pred_check_branch
        %198 = sbr.rel (%p196) target = $region20
      $region19: #{ffn_forward.1} parent=5 // pred_region
        // Predicated region
        $region21: #{ffn_forward.1} parent=19 // pred_check
          %p199 = pneg %p46
        $region22: #{ffn_forward.1} parent=19 // pred_check_branch
          %201 = sbr.rel (%p199) target = $region24
        $region23: #{ffn_forward.1} parent=19 // pred_region
          %s202 = smul.u32 16, %s21
          %p203 = scmp.lt.s32.totalorder %s202, 31
          %s204 = scalar_select %p203, %s202, 31
          %s205 = smul.addr %s204, 2
          %s206 = smul.addr %s205, 8
          %s207 = scalar_lea.vmem %s0, %s206
          %s208 = smul.u32 16, %s21
        $region24: #{ffn_forward.1} parent=19 // pred_fallthru
          _
        // Predicated region
        $region25: #{ffn_forward.1} parent=19 // pred_check
          %p209 = pneg %p72
        $region26: #{ffn_forward.1} parent=19 // pred_check_branch
          %211 = sbr.rel (%p209) target = $region28
        $region27: #{ffn_forward.1} parent=19 // pred_region
          %s212 = sand.u32 %s62, 1
          %s213 = sand.u32 %s62, 1
          %s214 = smul.addr %s213, 512
          %s215 = scalar_lea.vmem [#allocation3], %s214
          %s216 = smul.u32 4, %s22
          %s217 = smul.addr %s216, 4
          %s218 = scalar_lea.vmem %s1, %s217
          // Predicated region
          $region29: #{ffn_forward.1} parent=27 // pred_check
            _
          $region30: #{ffn_forward.1} parent=27 // pred_check_branch
            %220 = sbr.rel (0) target = $region32
          $region31: #{ffn_forward.1} parent=27 // pred_region
            // Predicated region
            $region33: #{ffn_forward.1} parent=31 // pred_check
              _
            $region34: #{ffn_forward.1} parent=31 // pred_check_branch
              %222 = sbr.rel (0) target = $region36
            $region35: #{ffn_forward.1} parent=31 // pred_region
              loop: start=0, step=1, limit=1
              $region37: #{ffn_forward.1} parent=35 // loop_pre_header
                _
              $region38: #{ffn_forward.1} parent=35 // loop_header
                %s224 = sphi 0, %s228
                %p225 = scmp.ge.s32.totalorder %s224, 1
                %s229 = sphi %s218, %s218
                %s230 = sphi %s215, %s215
              $region39: #{ffn_forward.1} parent=35 // loop_header_branch
                %227 = sbr.rel (%p225) target = $region43
              $region40: #{ffn_forward.1} parent=35 // loop_body
                %v231 = vld [vmem:[%s229] sm:$0xff]
                %232 = vst [vmem:[%s230] sm:$0xff] %v231
                %v233 = vld [vmem:[%s229 + $0x8] sm:$0xff]
                %234 = vst [vmem:[%s230 + $0x8] sm:$0xff] %v233
                %v235 = vld [vmem:[%s229 + $0x20] sm:$0xff]
                %236 = vst [vmem:[%s230 + $0x10] sm:$0xff] %v235
                %v237 = vld [vmem:[%s229 + $0x28] sm:$0xff]
                %238 = vst [vmem:[%s230 + $0x18] sm:$0xff] %v237
                %v239 = vld [vmem:[%s229 + $0x40] sm:$0xff]
                %240 = vst [vmem:[%s230 + $0x20] sm:$0xff] %v239
                %v241 = vld [vmem:[%s229 + $0x48] sm:$0xff]
                %242 = vst [vmem:[%s230 + $0x28] sm:$0xff] %v241
                %v243 = vld [vmem:[%s229 + $0x60] sm:$0xff]
                %244 = vst [vmem:[%s230 + $0x30] sm:$0xff] %v243
                %v245 = vld [vmem:[%s229 + $0x68] sm:$0xff]
                %246 = vst [vmem:[%s230 + $0x38] sm:$0xff] %v245
                %v247 = vld [vmem:[%s229 + $0x80] sm:$0xff]
                %248 = vst [vmem:[%s230 + $0x40] sm:$0xff] %v247
                %v249 = vld [vmem:[%s229 + $0x88] sm:$0xff]
                %250 = vst [vmem:[%s230 + $0x48] sm:$0xff] %v249
                %v251 = vld [vmem:[%s229 + $0xa0] sm:$0xff]
                %252 = vst [vmem:[%s230 + $0x50] sm:$0xff] %v251
                %v253 = vld [vmem:[%s229 + $0xa8] sm:$0xff]
                %254 = vst [vmem:[%s230 + $0x58] sm:$0xff] %v253
                %v255 = vld [vmem:[%s229 + $0xc0] sm:$0xff]
                %256 = vst [vmem:[%s230 + $0x60] sm:$0xff] %v255
                %v257 = vld [vmem:[%s229 + $0xc8] sm:$0xff]
                %258 = vst [vmem:[%s230 + $0x68] sm:$0xff] %v257
                %v259 = vld [vmem:[%s229 + $0xe0] sm:$0xff]
                %260 = vst [vmem:[%s230 + $0x70] sm:$0xff] %v259
                %v261 = vld [vmem:[%s229 + $0xe8] sm:$0xff]
                %262 = vst [vmem:[%s230 + $0x78] sm:$0xff] %v261
                %v263 = vld [vmem:[%s229 + $0x100] sm:$0xff]
                %264 = vst [vmem:[%s230 + $0x80] sm:$0xff] %v263
                %v265 = vld [vmem:[%s229 + $0x108] sm:$0xff]
                %266 = vst [vmem:[%s230 + $0x88] sm:$0xff] %v265
                %v267 = vld [vmem:[%s229 + $0x120] sm:$0xff]
                %268 = vst [vmem:[%s230 + $0x90] sm:$0xff] %v267
                %v269 = vld [vmem:[%s229 + $0x128] sm:$0xff]
                %270 = vst [vmem:[%s230 + $0x98] sm:$0xff] %v269
                %v271 = vld [vmem:[%s229 + $0x140] sm:$0xff]
                %272 = vst [vmem:[%s230 + $0xa0] sm:$0xff] %v271
                %v273 = vld [vmem:[%s229 + $0x148] sm:$0xff]
                %274 = vst [vmem:[%s230 + $0xa8] sm:$0xff] %v273
                %v275 = vld [vmem:[%s229 + $0x160] sm:$0xff]
                %276 = vst [vmem:[%s230 + $0xb0] sm:$0xff] %v275
                %v277 = vld [vmem:[%s229 + $0x168] sm:$0xff]
                %278 = vst [vmem:[%s230 + $0xb8] sm:$0xff] %v277
                %v279 = vld [vmem:[%s229 + $0x180] sm:$0xff]
                %280 = vst [vmem:[%s230 + $0xc0] sm:$0xff] %v279
                %v281 = vld [vmem:[%s229 + $0x188] sm:$0xff]
                %282 = vst [vmem:[%s230 + $0xc8] sm:$0xff] %v281
                %v283 = vld [vmem:[%s229 + $0x1a0] sm:$0xff]
                %284 = vst [vmem:[%s230 + $0xd0] sm:$0xff] %v283
                %v285 = vld [vmem:[%s229 + $0x1a8] sm:$0xff]
                %286 = vst [vmem:[%s230 + $0xd8] sm:$0xff] %v285
                %v287 = vld [vmem:[%s229 + $0x1c0] sm:$0xff]
                %288 = vst [vmem:[%s230 + $0xe0] sm:$0xff] %v287
                %v289 = vld [vmem:[%s229 + $0x1c8] sm:$0xff]
                %290 = vst [vmem:[%s230 + $0xe8] sm:$0xff] %v289
                %v291 = vld [vmem:[%s229 + $0x1e0] sm:$0xff]
                %292 = vst [vmem:[%s230 + $0xf0] sm:$0xff] %v291
                %v293 = vld [vmem:[%s229 + $0x1e8] sm:$0xff]
                %294 = vst [vmem:[%s230 + $0xf8] sm:$0xff] %v293
                %v295 = vld [vmem:[%s229 + $0x200] sm:$0xff]
                %296 = vst [vmem:[%s230 + $0x100] sm:$0xff] %v295
                %v297 = vld [vmem:[%s229 + $0x208] sm:$0xff]
                %298 = vst [vmem:[%s230 + $0x108] sm:$0xff] %v297
                %v299 = vld [vmem:[%s229 + $0x220] sm:$0xff]
                %300 = vst [vmem:[%s230 + $0x110] sm:$0xff] %v299
                %v301 = vld [vmem:[%s229 + $0x228] sm:$0xff]
                %302 = vst [vmem:[%s230 + $0x118] sm:$0xff] %v301
                %v303 = vld [vmem:[%s229 + $0x240] sm:$0xff]
                %304 = vst [vmem:[%s230 + $0x120] sm:$0xff] %v303
                %v305 = vld [vmem:[%s229 + $0x248] sm:$0xff]
                %306 = vst [vmem:[%s230 + $0x128] sm:$0xff] %v305
                %v307 = vld [vmem:[%s229 + $0x260] sm:$0xff]
                %308 = vst [vmem:[%s230 + $0x130] sm:$0xff] %v307
                %v309 = vld [vmem:[%s229 + $0x268] sm:$0xff]
                %310 = vst [vmem:[%s230 + $0x138] sm:$0xff] %v309
                %v311 = vld [vmem:[%s229 + $0x280] sm:$0xff]
                %312 = vst [vmem:[%s230 + $0x140] sm:$0xff] %v311
                %v313 = vld [vmem:[%s229 + $0x288] sm:$0xff]
                %314 = vst [vmem:[%s230 + $0x148] sm:$0xff] %v313
                %v315 = vld [vmem:[%s229 + $0x2a0] sm:$0xff]
                %316 = vst [vmem:[%s230 + $0x150] sm:$0xff] %v315
                %v317 = vld [vmem:[%s229 + $0x2a8] sm:$0xff]
                %318 = vst [vmem:[%s230 + $0x158] sm:$0xff] %v317
                %v319 = vld [vmem:[%s229 + $0x2c0] sm:$0xff]
                %320 = vst [vmem:[%s230 + $0x160] sm:$0xff] %v319
                %v321 = vld [vmem:[%s229 + $0x2c8] sm:$0xff]
                %322 = vst [vmem:[%s230 + $0x168] sm:$0xff] %v321
                %v323 = vld [vmem:[%s229 + $0x2e0] sm:$0xff]
                %324 = vst [vmem:[%s230 + $0x170] sm:$0xff] %v323
                %v325 = vld [vmem:[%s229 + $0x2e8] sm:$0xff]
                %326 = vst [vmem:[%s230 + $0x178] sm:$0xff] %v325
                %v327 = vld [vmem:[%s229 + $0x300] sm:$0xff]
                %328 = vst [vmem:[%s230 + $0x180] sm:$0xff] %v327
                %v329 = vld [vmem:[%s229 + $0x308] sm:$0xff]
                %330 = vst [vmem:[%s230 + $0x188] sm:$0xff] %v329
                %v331 = vld [vmem:[%s229 + $0x320] sm:$0xff]
                %332 = vst [vmem:[%s230 + $0x190] sm:$0xff] %v331
                %v333 = vld [vmem:[%s229 + $0x328] sm:$0xff]
                %334 = vst [vmem:[%s230 + $0x198] sm:$0xff] %v333
                %v335 = vld [vmem:[%s229 + $0x340] sm:$0xff]
                %336 = vst [vmem:[%s230 + $0x1a0] sm:$0xff] %v335
                %v337 = vld [vmem:[%s229 + $0x348] sm:$0xff]
                %338 = vst [vmem:[%s230 + $0x1a8] sm:$0xff] %v337
                %v339 = vld [vmem:[%s229 + $0x360] sm:$0xff]
                %340 = vst [vmem:[%s230 + $0x1b0] sm:$0xff] %v339
                %v341 = vld [vmem:[%s229 + $0x368] sm:$0xff]
                %342 = vst [vmem:[%s230 + $0x1b8] sm:$0xff] %v341
                %v343 = vld [vmem:[%s229 + $0x380] sm:$0xff]
                %344 = vst [vmem:[%s230 + $0x1c0] sm:$0xff] %v343
                %v345 = vld [vmem:[%s229 + $0x388] sm:$0xff]
                %346 = vst [vmem:[%s230 + $0x1c8] sm:$0xff] %v345
                %v347 = vld [vmem:[%s229 + $0x3a0] sm:$0xff]
                %348 = vst [vmem:[%s230 + $0x1d0] sm:$0xff] %v347
                %v349 = vld [vmem:[%s229 + $0x3a8] sm:$0xff]
                %350 = vst [vmem:[%s230 + $0x1d8] sm:$0xff] %v349
                %v351 = vld [vmem:[%s229 + $0x3c0] sm:$0xff]
                %352 = vst [vmem:[%s230 + $0x1e0] sm:$0xff] %v351
                %v353 = vld [vmem:[%s229 + $0x3c8] sm:$0xff]
                %354 = vst [vmem:[%s230 + $0x1e8] sm:$0xff] %v353
                %v355 = vld [vmem:[%s229 + $0x3e0] sm:$0xff]
                %356 = vst [vmem:[%s230 + $0x1f0] sm:$0xff] %v355
                %v357 = vld [vmem:[%s229 + $0x3e8] sm:$0xff]
                %358 = vst [vmem:[%s230 + $0x1f8] sm:$0xff] %v357
              $region41: #{ffn_forward.1} parent=35 // loop_footer
                %s228 = sadd.s32 1, %s224
              $region42: #{ffn_forward.1} parent=35 // loop_footer_branch
                %223 = sbr.rel target = $region38
              $region43: #{ffn_forward.1} parent=35 // loop_exit
                _
            $region36: #{ffn_forward.1} parent=31 // pred_fallthru
              _
            // Predicated region
            $region44: #{ffn_forward.1} parent=31 // pred_check
              _
            $region45: #{ffn_forward.1} parent=31 // pred_check_branch
              %360 = sbr.rel target = $region47
            $region46: #{ffn_forward.1} parent=31 // pred_region
              _
            $region47: #{ffn_forward.1} parent=31 // pred_fallthru
              _
          $region32: #{ffn_forward.1} parent=27 // pred_fallthru
            _
          %361 = vnop
        $region28: #{ffn_forward.1} parent=19 // pred_fallthru
          _
        // Predicated region
        $region48: #{ffn_forward.1} parent=19 // pred_check
          %p362 = pneg %p98
        $region49: #{ffn_forward.1} parent=19 // pred_check_branch
          %364 = sbr.rel (%p362) target = $region51
        $region50: #{ffn_forward.1} parent=19 // pred_region
          %s365 = smul.u32 4, %s22
          %p366 = scmp.lt.s32.totalorder %s365, 7
          %s367 = scalar_select %p366, %s365, 7
          %s368 = scalar_lea.vmem %s2, %s367
          %s369 = smul.u32 4, %s22
        $region51: #{ffn_forward.1} parent=19 // pred_fallthru
          _
        // Predicated region
        $region52: #{ffn_forward.1} parent=19 // pred_check
          %p370 = pneg %p124
        $region53: #{ffn_forward.1} parent=19 // pred_check_branch
          %372 = sbr.rel (%p370) target = $region55
        $region54: #{ffn_forward.1} parent=19 // pred_region
          %s373 = smul.u32 64, %s22
          %p374 = scmp.lt.s32.totalorder %s373, 127
          %s375 = scalar_select %p374, %s373, 127
          %s376 = smul.addr %s375, 2
          %s377 = smul.addr %s376, 4
          %s378 = scalar_lea.vmem %s3, %s377
          %s379 = smul.u32 64, %s22
        $region55: #{ffn_forward.1} parent=19 // pred_fallthru
          _
      $region20: #{ffn_forward.1} parent=5 // pred_fallthru
        _
      %p380 = scmp.le.s32.totalorder 1, %s14
      %p381 = scmp.lt.s32.totalorder %s14, 5
      %p382 = pnand %p380, %p381
      %p383 = pneg %p382
      // Predicated region
      $region56: #{ffn_forward.1} parent=5 // pred_check
        _
      $region57: #{ffn_forward.1} parent=5 // pred_check_branch
        %385 = sbr.rel (%p382) target = $region59
      $region58: #{ffn_forward.1} parent=5 // pred_region
        %s386 = ssub.s32 %s14, 1
        %s387 = sand.u32 %s65, 1
        %s388 = sand.u32 %s65, 1
        %s389 = smul.addr %s388, 512
        %s390 = scalar_lea.vmem [#allocation3], %s389
        // Predicated region
        $region60: #{ffn_forward.1} parent=58 // pred_check
          %p391 = pneg %p78
        $region61: #{ffn_forward.1} parent=58 // pred_check_branch
          %393 = sbr.rel (%p391) target = $region63
        $region62: #{ffn_forward.1} parent=58 // pred_region
          _
        $region63: #{ffn_forward.1} parent=58 // pred_fallthru
          _
        %s394 = smul.u32 16, %s23
        %p395 = scmp.lt.s32.totalorder %s394, 31
        %s396 = scalar_select %p395, %s394, 31
        %s397 = smul.addr %s396, 2
        %s398 = smul.addr %s397, 8
        %s399 = scalar_lea.vmem %s0, %s398
        %p400 = pneg %p52
        %p401 = pneg %p49
        %s402 = sand.u32 %s65, 1
        %s403 = sand.u32 %s65, 1
        %s404 = smul.addr %s403, 512
        %s405 = scalar_lea.vmem [#allocation3], %s404
        %p406 = pneg %p78
        %p407 = pneg %p75
        %s408 = smul.u32 4, %s24
        %p409 = scmp.lt.s32.totalorder %s408, 7
        %s410 = scalar_select %p409, %s408, 7
        %s411 = scalar_lea.vmem %s2, %s410
        %p412 = pneg %p104
        %p413 = pneg %p101
        %s414 = smul.u32 64, %s24
        %p415 = scmp.lt.s32.totalorder %s414, 127
        %s416 = scalar_select %p415, %s414, 127
        %s417 = smul.addr %s416, 2
        %s418 = smul.addr %s417, 4
        %s419 = scalar_lea.vmem %s3, %s418
        %p420 = pneg %p130
        %p421 = pneg %p127
        %p422 = pneg %p151
        %p423 = pneg %p148
        %p424 = pneg %p177
        %p425 = pneg %p174
        %s426 = sand.u32 %s164, 1
        %s427 = scalar_lea.sflag [#allocation5], %s426
        %s428 = sand.u32 %s164, 1
        %s429 = smul.addr %s428, 256
        %s430 = scalar_lea.vmem [#allocation4], %s429
        %s431 = smul.u32 16, %s23
        %p432 = scmp.lt.s32.totalorder %s431, 31
        %s433 = scalar_select %p432, %s431, 31
        %s434 = smul.addr %s433, 2
        %s435 = smul.addr %s434, 8
        %s436 = scalar_lea.vmem %s0, %s435
        %s437 = smul.u32 16, %s23
        %s438 = smul.u32 4, %s24
        %s439 = smul.u32 4, %s24
        %p440 = scmp.lt.s32.totalorder %s439, 7
        %s441 = scalar_select %p440, %s439, 7
        %s442 = scalar_lea.vmem %s2, %s441
        %s443 = smul.u32 4, %s24
        %s444 = smul.u32 64, %s24
        %p445 = scmp.lt.s32.totalorder %s444, 127
        %s446 = scalar_select %p445, %s444, 127
        %s447 = smul.addr %s446, 2
        %s448 = smul.addr %s447, 4
        %s449 = scalar_lea.vmem %s3, %s448
        %s450 = smul.u32 64, %s24
        %s451 = smul.u32 16, %s23
        %v452 = vld [vmem:[%s436] sm:$0xff]
        %v453 = vld [vmem:[%s436 + $0x8] sm:$0xff]
        %v454 = vld [vmem:[%s436 + $0x10] sm:$0xff]
        %v455 = vld [vmem:[%s436 + $0x18] sm:$0xff]
        %v456 = vld [vmem:[%s436 + $0x20] sm:$0xff]
        %v457 = vld [vmem:[%s436 + $0x28] sm:$0xff]
        %v458 = vld [vmem:[%s436 + $0x30] sm:$0xff]
        %v459 = vld [vmem:[%s436 + $0x38] sm:$0xff]
        %v460 = vld [vmem:[%s436 + $0x40] sm:$0xff]
        %v461 = vld [vmem:[%s436 + $0x48] sm:$0xff]
        %v462 = vld [vmem:[%s436 + $0x50] sm:$0xff]
        %v463 = vld [vmem:[%s436 + $0x58] sm:$0xff]
        %v464 = vld [vmem:[%s436 + $0x60] sm:$0xff]
        %v465 = vld [vmem:[%s436 + $0x68] sm:$0xff]
        %v466 = vld [vmem:[%s436 + $0x70] sm:$0xff]
        %v467 = vld [vmem:[%s436 + $0x78] sm:$0xff]
        %v468 = vld [vmem:[%s436 + $0x80] sm:$0xff]
        %v469 = vld [vmem:[%s436 + $0x88] sm:$0xff]
        %v470 = vld [vmem:[%s436 + $0x90] sm:$0xff]
        %v471 = vld [vmem:[%s436 + $0x98] sm:$0xff]
        %v472 = vld [vmem:[%s436 + $0xa0] sm:$0xff]
        %v473 = vld [vmem:[%s436 + $0xa8] sm:$0xff]
        %v474 = vld [vmem:[%s436 + $0xb0] sm:$0xff]
        %v475 = vld [vmem:[%s436 + $0xb8] sm:$0xff]
        %v476 = vld [vmem:[%s436 + $0xc0] sm:$0xff]
        %v477 = vld [vmem:[%s436 + $0xc8] sm:$0xff]
        %v478 = vld [vmem:[%s436 + $0xd0] sm:$0xff]
        %v479 = vld [vmem:[%s436 + $0xd8] sm:$0xff]
        %v480 = vld [vmem:[%s436 + $0xe0] sm:$0xff]
        %v481 = vld [vmem:[%s436 + $0xe8] sm:$0xff]
        %v482 = vld [vmem:[%s436 + $0xf0] sm:$0xff]
        %v483 = vld [vmem:[%s436 + $0xf8] sm:$0xff]
        %p484 = scmp.eq.s32.totalorder %s24, 0
        // Predicated region
        $region64: #{ffn_forward.1} parent=58 // pred_check
          %p485 = pneg %p484
        $region65: #{ffn_forward.1} parent=58 // pred_check_branch
          %487 = sbr.rel (%p485) target = $region67
        $region66: #{ffn_forward.1} parent=58 // pred_region
          %488 = vst [vmem:[#allocation2] sm:$0xff] 0.0
          %489 = vst [vmem:[#allocation2 + $0x8] sm:$0xff] 0.0
          %490 = vst [vmem:[#allocation2 + $0x10] sm:$0xff] 0.0
          %491 = vst [vmem:[#allocation2 + $0x18] sm:$0xff] 0.0
          %492 = vst [vmem:[#allocation2 + $0x20] sm:$0xff] 0.0
          %493 = vst [vmem:[#allocation2 + $0x28] sm:$0xff] 0.0
          %494 = vst [vmem:[#allocation2 + $0x30] sm:$0xff] 0.0
          %495 = vst [vmem:[#allocation2 + $0x38] sm:$0xff] 0.0
          %496 = vst [vmem:[#allocation2 + $0x40] sm:$0xff] 0.0
          %497 = vst [vmem:[#allocation2 + $0x48] sm:$0xff] 0.0
          %498 = vst [vmem:[#allocation2 + $0x50] sm:$0xff] 0.0
          %499 = vst [vmem:[#allocation2 + $0x58] sm:$0xff] 0.0
          %500 = vst [vmem:[#allocation2 + $0x60] sm:$0xff] 0.0
          %501 = vst [vmem:[#allocation2 + $0x68] sm:$0xff] 0.0
          %502 = vst [vmem:[#allocation2 + $0x70] sm:$0xff] 0.0
          %503 = vst [vmem:[#allocation2 + $0x78] sm:$0xff] 0.0
          %504 = vst [vmem:[#allocation2 + $0x80] sm:$0xff] 0.0
          %505 = vst [vmem:[#allocation2 + $0x88] sm:$0xff] 0.0
          %506 = vst [vmem:[#allocation2 + $0x90] sm:$0xff] 0.0
          %507 = vst [vmem:[#allocation2 + $0x98] sm:$0xff] 0.0
          %508 = vst [vmem:[#allocation2 + $0xa0] sm:$0xff] 0.0
          %509 = vst [vmem:[#allocation2 + $0xa8] sm:$0xff] 0.0
          %510 = vst [vmem:[#allocation2 + $0xb0] sm:$0xff] 0.0
          %511 = vst [vmem:[#allocation2 + $0xb8] sm:$0xff] 0.0
          %512 = vst [vmem:[#allocation2 + $0xc0] sm:$0xff] 0.0
          %513 = vst [vmem:[#allocation2 + $0xc8] sm:$0xff] 0.0
          %514 = vst [vmem:[#allocation2 + $0xd0] sm:$0xff] 0.0
          %515 = vst [vmem:[#allocation2 + $0xd8] sm:$0xff] 0.0
          %516 = vst [vmem:[#allocation2 + $0xe0] sm:$0xff] 0.0
          %517 = vst [vmem:[#allocation2 + $0xe8] sm:$0xff] 0.0
          %518 = vst [vmem:[#allocation2 + $0xf0] sm:$0xff] 0.0
          %519 = vst [vmem:[#allocation2 + $0xf8] sm:$0xff] 0.0
        $region67: #{ffn_forward.1} parent=58 // pred_fallthru
          _
        %v520 = vld [vmem:[#allocation2] sm:$0xff]
        %v521 = vld [vmem:[#allocation2 + $0x8] sm:$0xff]
        %v522 = vld [vmem:[#allocation2 + $0x10] sm:$0xff]
        %v523 = vld [vmem:[#allocation2 + $0x18] sm:$0xff]
        %v524 = vld [vmem:[#allocation2 + $0x20] sm:$0xff]
        %v525 = vld [vmem:[#allocation2 + $0x28] sm:$0xff]
        %v526 = vld [vmem:[#allocation2 + $0x30] sm:$0xff]
        %v527 = vld [vmem:[#allocation2 + $0x38] sm:$0xff]
        %v528 = vld [vmem:[#allocation2 + $0x40] sm:$0xff]
        %v529 = vld [vmem:[#allocation2 + $0x48] sm:$0xff]
        %v530 = vld [vmem:[#allocation2 + $0x50] sm:$0xff]
        %v531 = vld [vmem:[#allocation2 + $0x58] sm:$0xff]
        %v532 = vld [vmem:[#allocation2 + $0x60] sm:$0xff]
        %v533 = vld [vmem:[#allocation2 + $0x68] sm:$0xff]
        %v534 = vld [vmem:[#allocation2 + $0x70] sm:$0xff]
        %v535 = vld [vmem:[#allocation2 + $0x78] sm:$0xff]
        %v536 = vld [vmem:[#allocation2 + $0x80] sm:$0xff]
        %v537 = vld [vmem:[#allocation2 + $0x88] sm:$0xff]
        %v538 = vld [vmem:[#allocation2 + $0x90] sm:$0xff]
        %v539 = vld [vmem:[#allocation2 + $0x98] sm:$0xff]
        %v540 = vld [vmem:[#allocation2 + $0xa0] sm:$0xff]
        %v541 = vld [vmem:[#allocation2 + $0xa8] sm:$0xff]
        %v542 = vld [vmem:[#allocation2 + $0xb0] sm:$0xff]
        %v543 = vld [vmem:[#allocation2 + $0xb8] sm:$0xff]
        %v544 = vld [vmem:[#allocation2 + $0xc0] sm:$0xff]
        %v545 = vld [vmem:[#allocation2 + $0xc8] sm:$0xff]
        %v546 = vld [vmem:[#allocation2 + $0xd0] sm:$0xff]
        %v547 = vld [vmem:[#allocation2 + $0xd8] sm:$0xff]
        %v548 = vld [vmem:[#allocation2 + $0xe0] sm:$0xff]
        %v549 = vld [vmem:[#allocation2 + $0xe8] sm:$0xff]
        %v550 = vld [vmem:[#allocation2 + $0xf0] sm:$0xff]
        %v551 = vld [vmem:[#allocation2 + $0xf8] sm:$0xff]
        %v552 = vpack.c.bf16 %v454, %v452
        %v553 = vpack.c.bf16 %v455, %v453
        %v554 = vpack.c.bf16 %v458, %v456
        %v555 = vpack.c.bf16 %v459, %v457
        %v556 = vpack.c.bf16 %v462, %v460
        %v557 = vpack.c.bf16 %v463, %v461
        %v558 = vpack.c.bf16 %v466, %v464
        %v559 = vpack.c.bf16 %v467, %v465
        %v560 = vpack.c.bf16 %v470, %v468
        %v561 = vpack.c.bf16 %v471, %v469
        %v562 = vpack.c.bf16 %v474, %v472
        %v563 = vpack.c.bf16 %v475, %v473
        %v564 = vpack.c.bf16 %v478, %v476
        %v565 = vpack.c.bf16 %v479, %v477
        %v566 = vpack.c.bf16 %v482, %v480
        %v567 = vpack.c.bf16 %v483, %v481
        %v568 = vld [vmem:[%s390] sm:$0xff]
        %v569 = vld [vmem:[%s390 + $0x8] sm:$0xff]
        %v570 = vld [vmem:[%s390 + $0x10] sm:$0xff]
        %v571 = vld [vmem:[%s390 + $0x18] sm:$0xff]
        %v572 = vld [vmem:[%s390 + $0x20] sm:$0xff]
        %v573 = vld [vmem:[%s390 + $0x28] sm:$0xff]
        %v574 = vld [vmem:[%s390 + $0x30] sm:$0xff]
        %v575 = vld [vmem:[%s390 + $0x38] sm:$0xff]
        %v576 = vld [vmem:[%s390 + $0x40] sm:$0xff]
        %v577 = vld [vmem:[%s390 + $0x48] sm:$0xff]
        %v578 = vld [vmem:[%s390 + $0x50] sm:$0xff]
        %v579 = vld [vmem:[%s390 + $0x58] sm:$0xff]
        %v580 = vld [vmem:[%s390 + $0x60] sm:$0xff]
        %v581 = vld [vmem:[%s390 + $0x68] sm:$0xff]
        %v582 = vld [vmem:[%s390 + $0x70] sm:$0xff]
        %v583 = vld [vmem:[%s390 + $0x78] sm:$0xff]
        %v584 = vld [vmem:[%s390 + $0x80] sm:$0xff]
        %v585 = vld [vmem:[%s390 + $0x88] sm:$0xff]
        %v586 = vld [vmem:[%s390 + $0x90] sm:$0xff]
        %v587 = vld [vmem:[%s390 + $0x98] sm:$0xff]
        %v588 = vld [vmem:[%s390 + $0xa0] sm:$0xff]
        %v589 = vld [vmem:[%s390 + $0xa8] sm:$0xff]
        %v590 = vld [vmem:[%s390 + $0xb0] sm:$0xff]
        %v591 = vld [vmem:[%s390 + $0xb8] sm:$0xff]
        %v592 = vld [vmem:[%s390 + $0xc0] sm:$0xff]
        %v593 = vld [vmem:[%s390 + $0xc8] sm:$0xff]
        %v594 = vld [vmem:[%s390 + $0xd0] sm:$0xff]
        %v595 = vld [vmem:[%s390 + $0xd8] sm:$0xff]
        %v596 = vld [vmem:[%s390 + $0xe0] sm:$0xff]
        %v597 = vld [vmem:[%s390 + $0xe8] sm:$0xff]
        %v598 = vld [vmem:[%s390 + $0xf0] sm:$0xff]
        %v599 = vld [vmem:[%s390 + $0xf8] sm:$0xff]
        %v600 = vld [vmem:[%s390 + $0x100] sm:$0xff]
        %v601 = vld [vmem:[%s390 + $0x108] sm:$0xff]
        %v602 = vld [vmem:[%s390 + $0x110] sm:$0xff]
        %v603 = vld [vmem:[%s390 + $0x118] sm:$0xff]
        %v604 = vld [vmem:[%s390 + $0x120] sm:$0xff]
        %v605 = vld [vmem:[%s390 + $0x128] sm:$0xff]
        %v606 = vld [vmem:[%s390 + $0x130] sm:$0xff]
        %v607 = vld [vmem:[%s390 + $0x138] sm:$0xff]
        %v608 = vld [vmem:[%s390 + $0x140] sm:$0xff]
        %v609 = vld [vmem:[%s390 + $0x148] sm:$0xff]
        %v610 = vld [vmem:[%s390 + $0x150] sm:$0xff]
        %v611 = vld [vmem:[%s390 + $0x158] sm:$0xff]
        %v612 = vld [vmem:[%s390 + $0x160] sm:$0xff]
        %v613 = vld [vmem:[%s390 + $0x168] sm:$0xff]
        %v614 = vld [vmem:[%s390 + $0x170] sm:$0xff]
        %v615 = vld [vmem:[%s390 + $0x178] sm:$0xff]
        %v616 = vld [vmem:[%s390 + $0x180] sm:$0xff]
        %v617 = vld [vmem:[%s390 + $0x188] sm:$0xff]
        %v618 = vld [vmem:[%s390 + $0x190] sm:$0xff]
        %v619 = vld [vmem:[%s390 + $0x198] sm:$0xff]
        %v620 = vld [vmem:[%s390 + $0x1a0] sm:$0xff]
        %v621 = vld [vmem:[%s390 + $0x1a8] sm:$0xff]
        %v622 = vld [vmem:[%s390 + $0x1b0] sm:$0xff]
        %v623 = vld [vmem:[%s390 + $0x1b8] sm:$0xff]
        %v624 = vld [vmem:[%s390 + $0x1c0] sm:$0xff]
        %v625 = vld [vmem:[%s390 + $0x1c8] sm:$0xff]
        %v626 = vld [vmem:[%s390 + $0x1d0] sm:$0xff]
        %v627 = vld [vmem:[%s390 + $0x1d8] sm:$0xff]
        %v628 = vld [vmem:[%s390 + $0x1e0] sm:$0xff]
        %v629 = vld [vmem:[%s390 + $0x1e8] sm:$0xff]
        %v630 = vld [vmem:[%s390 + $0x1f0] sm:$0xff]
        %v631 = vld [vmem:[%s390 + $0x1f8] sm:$0xff]
        %v632 = vld [vmem:[%s442] sm:$0xf]
        %v634 = vlaneseq
        %v635 = vshrl.u32 %v634, 7
        %v636 = vsub.s32 0, %v635
        %v637 = vrot.slane %v632, %v636
        %v638 = vlaneseq
        %v639 = vshrl.u32 %v638, 7
        %v640 = vsub.s32 1, %v639
        %v641 = vrot.slane %v632, %v640
        %v642 = vlaneseq
        %v643 = vshrl.u32 %v642, 7
        %v644 = vsub.s32 2, %v643
        %v645 = vrot.slane %v632, %v644
        %v646 = vlaneseq
        %v647 = vshrl.u32 %v646, 7
        %v648 = vsub.s32 3, %v647
        %v649 = vrot.slane %v632, %v648
        %v718 = vunpack.c.l.b16 %v568
        %v719 = vunpack.c.h.b16 %v568
        %v720 = vunpack.c.l.b16 %v569
        %v721 = vunpack.c.h.b16 %v569
        %v722 = vunpack.c.l.b16 %v570
        %v723 = vunpack.c.h.b16 %v570
        %v724 = vunpack.c.l.b16 %v571
        %v725 = vunpack.c.h.b16 %v571
        %v726 = vunpack.c.l.b16 %v572
        %v727 = vunpack.c.h.b16 %v572
        %v728 = vunpack.c.l.b16 %v573
        %v729 = vunpack.c.h.b16 %v573
        %v730 = vunpack.c.l.b16 %v574
        %v731 = vunpack.c.h.b16 %v574
        %v732 = vunpack.c.l.b16 %v575
        %v733 = vunpack.c.h.b16 %v575
        %v734 = vunpack.c.l.b16 %v576
        %v735 = vunpack.c.h.b16 %v576
        %v736 = vunpack.c.l.b16 %v577
        %v737 = vunpack.c.h.b16 %v577
        %v738 = vunpack.c.l.b16 %v578
        %v739 = vunpack.c.h.b16 %v578
        %v740 = vunpack.c.l.b16 %v579
        %v741 = vunpack.c.h.b16 %v579
        %v742 = vunpack.c.l.b16 %v580
        %v743 = vunpack.c.h.b16 %v580
        %v744 = vunpack.c.l.b16 %v581
        %v745 = vunpack.c.h.b16 %v581
        %v746 = vunpack.c.l.b16 %v582
        %v747 = vunpack.c.h.b16 %v582
        %v748 = vunpack.c.l.b16 %v583
        %v749 = vunpack.c.h.b16 %v583
        %v750 = vunpack.c.l.b16 %v584
        %v751 = vunpack.c.h.b16 %v584
        %v752 = vunpack.c.l.b16 %v585
        %v753 = vunpack.c.h.b16 %v585
        %v754 = vunpack.c.l.b16 %v586
        %v755 = vunpack.c.h.b16 %v586
        %v756 = vunpack.c.l.b16 %v587
        %v757 = vunpack.c.h.b16 %v587
        %v758 = vunpack.c.l.b16 %v588
        %v759 = vunpack.c.h.b16 %v588
        %v760 = vunpack.c.l.b16 %v589
        %v761 = vunpack.c.h.b16 %v589
        %v762 = vunpack.c.l.b16 %v590
        %v763 = vunpack.c.h.b16 %v590
        %v764 = vunpack.c.l.b16 %v591
        %v765 = vunpack.c.h.b16 %v591
        %v766 = vunpack.c.l.b16 %v592
        %v767 = vunpack.c.h.b16 %v592
        %v768 = vunpack.c.l.b16 %v593
        %v769 = vunpack.c.h.b16 %v593
        %v770 = vunpack.c.l.b16 %v594
        %v771 = vunpack.c.h.b16 %v594
        %v772 = vunpack.c.l.b16 %v595
        %v773 = vunpack.c.h.b16 %v595
        %v774 = vunpack.c.l.b16 %v596
        %v775 = vunpack.c.h.b16 %v596
        %v776 = vunpack.c.l.b16 %v597
        %v777 = vunpack.c.h.b16 %v597
        %v778 = vunpack.c.l.b16 %v598
        %v779 = vunpack.c.h.b16 %v598
        %v780 = vunpack.c.l.b16 %v599
        %v781 = vunpack.c.h.b16 %v599
        %v782 = vunpack.c.l.b16 %v600
        %v783 = vunpack.c.h.b16 %v600
        %v784 = vunpack.c.l.b16 %v601
        %v785 = vunpack.c.h.b16 %v601
        %v786 = vunpack.c.l.b16 %v602
        %v787 = vunpack.c.h.b16 %v602
        %v788 = vunpack.c.l.b16 %v603
        %v789 = vunpack.c.h.b16 %v603
        %v790 = vunpack.c.l.b16 %v604
        %v791 = vunpack.c.h.b16 %v604
        %v792 = vunpack.c.l.b16 %v605
        %v793 = vunpack.c.h.b16 %v605
        %v794 = vunpack.c.l.b16 %v606
        %v795 = vunpack.c.h.b16 %v606
        %v796 = vunpack.c.l.b16 %v607
        %v797 = vunpack.c.h.b16 %v607
        %v798 = vunpack.c.l.b16 %v608
        %v799 = vunpack.c.h.b16 %v608
        %v800 = vunpack.c.l.b16 %v609
        %v801 = vunpack.c.h.b16 %v609
        %v802 = vunpack.c.l.b16 %v610
        %v803 = vunpack.c.h.b16 %v610
        %v804 = vunpack.c.l.b16 %v611
        %v805 = vunpack.c.h.b16 %v611
        %v806 = vunpack.c.l.b16 %v612
        %v807 = vunpack.c.h.b16 %v612
        %v808 = vunpack.c.l.b16 %v613
        %v809 = vunpack.c.h.b16 %v613
        %v810 = vunpack.c.l.b16 %v614
        %v811 = vunpack.c.h.b16 %v614
        %v812 = vunpack.c.l.b16 %v615
        %v813 = vunpack.c.h.b16 %v615
        %v814 = vunpack.c.l.b16 %v616
        %v815 = vunpack.c.h.b16 %v616
        %v816 = vunpack.c.l.b16 %v617
        %v817 = vunpack.c.h.b16 %v617
        %v818 = vunpack.c.l.b16 %v618
        %v819 = vunpack.c.h.b16 %v618
        %v820 = vunpack.c.l.b16 %v619
        %v821 = vunpack.c.h.b16 %v619
        %v822 = vunpack.c.l.b16 %v620
        %v823 = vunpack.c.h.b16 %v620
        %v824 = vunpack.c.l.b16 %v621
        %v825 = vunpack.c.h.b16 %v621
        %v826 = vunpack.c.l.b16 %v622
        %v827 = vunpack.c.h.b16 %v622
        %v828 = vunpack.c.l.b16 %v623
        %v829 = vunpack.c.h.b16 %v623
        %v830 = vunpack.c.l.b16 %v624
        %v831 = vunpack.c.h.b16 %v624
        %v832 = vunpack.c.l.b16 %v625
        %v833 = vunpack.c.h.b16 %v625
        %v834 = vunpack.c.l.b16 %v626
        %v835 = vunpack.c.h.b16 %v626
        %v836 = vunpack.c.l.b16 %v627
        %v837 = vunpack.c.h.b16 %v627
        %v838 = vunpack.c.l.b16 %v628
        %v839 = vunpack.c.h.b16 %v628
        %v840 = vunpack.c.l.b16 %v629
        %v841 = vunpack.c.h.b16 %v629
        %v842 = vunpack.c.l.b16 %v630
        %v843 = vunpack.c.h.b16 %v630
        %v844 = vunpack.c.l.b16 %v631
        %v845 = vunpack.c.h.b16 %v631
        %v846 = vpack.c.b16 %v722, %v718
        %v847 = vpack.c.b16 %v723, %v719
        %v848 = vpack.c.b16 %v724, %v720
        %v849 = vpack.c.b16 %v725, %v721
        %v850 = vpack.c.b16 %v730, %v726
        %v851 = vpack.c.b16 %v731, %v727
        %v852 = vpack.c.b16 %v732, %v728
        %v853 = vpack.c.b16 %v733, %v729
        %v854 = vpack.c.b16 %v738, %v734
        %v855 = vpack.c.b16 %v739, %v735
        %v856 = vpack.c.b16 %v740, %v736
        %v857 = vpack.c.b16 %v741, %v737
        %v858 = vpack.c.b16 %v746, %v742
        %v859 = vpack.c.b16 %v747, %v743
        %v860 = vpack.c.b16 %v748, %v744
        %v861 = vpack.c.b16 %v749, %v745
        %v862 = vpack.c.b16 %v754, %v750
        %v863 = vpack.c.b16 %v755, %v751
        %v864 = vpack.c.b16 %v756, %v752
        %v865 = vpack.c.b16 %v757, %v753
        %v866 = vpack.c.b16 %v762, %v758
        %v867 = vpack.c.b16 %v763, %v759
        %v868 = vpack.c.b16 %v764, %v760
        %v869 = vpack.c.b16 %v765, %v761
        %v870 = vpack.c.b16 %v770, %v766
        %v871 = vpack.c.b16 %v771, %v767
        %v872 = vpack.c.b16 %v772, %v768
        %v873 = vpack.c.b16 %v773, %v769
        %v874 = vpack.c.b16 %v778, %v774
        %v875 = vpack.c.b16 %v779, %v775
        %v876 = vpack.c.b16 %v780, %v776
        %v877 = vpack.c.b16 %v781, %v777
        %v878 = vpack.c.b16 %v786, %v782
        %v879 = vpack.c.b16 %v787, %v783
        %v880 = vpack.c.b16 %v788, %v784
        %v881 = vpack.c.b16 %v789, %v785
        %v882 = vpack.c.b16 %v794, %v790
        %v883 = vpack.c.b16 %v795, %v791
        %v884 = vpack.c.b16 %v796, %v792
        %v885 = vpack.c.b16 %v797, %v793
        %v886 = vpack.c.b16 %v802, %v798
        %v887 = vpack.c.b16 %v803, %v799
        %v888 = vpack.c.b16 %v804, %v800
        %v889 = vpack.c.b16 %v805, %v801
        %v890 = vpack.c.b16 %v810, %v806
        %v891 = vpack.c.b16 %v811, %v807
        %v892 = vpack.c.b16 %v812, %v808
        %v893 = vpack.c.b16 %v813, %v809
        %v894 = vpack.c.b16 %v818, %v814
        %v895 = vpack.c.b16 %v819, %v815
        %v896 = vpack.c.b16 %v820, %v816
        %v897 = vpack.c.b16 %v821, %v817
        %v898 = vpack.c.b16 %v826, %v822
        %v899 = vpack.c.b16 %v827, %v823
        %v900 = vpack.c.b16 %v828, %v824
        %v901 = vpack.c.b16 %v829, %v825
        %v902 = vpack.c.b16 %v834, %v830
        %v903 = vpack.c.b16 %v835, %v831
        %v904 = vpack.c.b16 %v836, %v832
        %v905 = vpack.c.b16 %v837, %v833
        %v906 = vpack.c.b16 %v842, %v838
        %v907 = vpack.c.b16 %v843, %v839
        %v908 = vpack.c.b16 %v844, %v840
        %v909 = vpack.c.b16 %v845, %v841
        %974 = vmatprep.subr.bf16.mxu0 %v847
        %975 = vmatpush1.bf16.msra.mxu0 %v846
        %976 = vmatprep.subr.bf16.mxu0 %v851
        %977 = vmatpush1.bf16.msra.mxu0 %v850
        %978 = vmatprep.subr.bf16.mxu0 %v855
        %979 = vmatpush1.bf16.msra.mxu0 %v854
        %980 = vmatprep.subr.bf16.mxu0 %v859
        %981 = vmatpush1.bf16.msra.mxu0 %v858
        %982 = vmatprep.subr.bf16.mxu0 %v863
        %983 = vmatpush1.bf16.msra.mxu0 %v862
        %984 = vmatprep.subr.bf16.mxu0 %v867
        %985 = vmatpush1.bf16.msra.mxu0 %v866
        %986 = vmatprep.subr.bf16.mxu0 %v871
        %987 = vmatpush1.bf16.msra.mxu0 %v870
        %988 = vmatprep.subr.bf16.mxu0 %v875
        %989 = vmatpush1.bf16.msra.mxu0 %v874
        %990 = vmatprep.subr.bf16.mxu0 %v879
        %991 = vmatpush1.bf16.msra.mxu0 %v878
        %992 = vmatprep.subr.bf16.mxu0 %v883
        %993 = vmatpush1.bf16.msra.mxu0 %v882
        %994 = vmatprep.subr.bf16.mxu0 %v887
        %995 = vmatpush1.bf16.msra.mxu0 %v886
        %996 = vmatprep.subr.bf16.mxu0 %v891
        %997 = vmatpush1.bf16.msra.mxu0 %v890
        %998 = vmatprep.subr.bf16.mxu0 %v895
        %999 = vmatpush1.bf16.msra.mxu0 %v894
        %1000 = vmatprep.subr.bf16.mxu0 %v899
        %1001 = vmatpush1.bf16.msra.mxu0 %v898
        %1002 = vmatprep.subr.bf16.mxu0 %v903
        %1003 = vmatpush1.bf16.msra.mxu0 %v902
        %1004 = vmatprep.subr.bf16.mxu0 %v907
        %1005 = vmatpush1.bf16.msra.mxu0 %v906
        %1006 = vmatprep.mubr.bf16.mxu0 %v553
        %1007 = vmatmul.mubr.bf16.gmra.mrb[0].mxu0 %v552
        %v1008 = vpop.f32.mrb[0].mxu0
        %v1009 = vadd.f32 %v637, %v1008
        %v1010 = vpop.f32.mrb[0].mxu0
        %v1011 = vadd.f32 %v641, %v1010
        %v1012 = vpop.f32.mrb[0].mxu0
        %v1013 = vadd.f32 %v637, %v1012
        %v1014 = vpop.f32.mrb[0].mxu0
        %v1015 = vadd.f32 %v641, %v1014
        %1016 = vmatprep.mubr.bf16.mxu0 %v555
        %1017 = vmatmul.mubr.bf16.gmra.mrb[0].mxu0 %v554
        %v1018 = vpop.f32.mrb[0].mxu0
        %v1019 = vadd.f32 %v637, %v1018
        %v1020 = vpop.f32.mrb[0].mxu0
        %v1021 = vadd.f32 %v641, %v1020
        %v1022 = vpop.f32.mrb[0].mxu0
        %v1023 = vadd.f32 %v637, %v1022
        %v1024 = vpop.f32.mrb[0].mxu0
        %v1025 = vadd.f32 %v641, %v1024
        %1026 = vmatprep.mubr.bf16.mxu0 %v557
        %1027 = vmatmul.mubr.bf16.gmra.mrb[0].mxu0 %v556
        %v1028 = vpop.f32.mrb[0].mxu0
        %v1029 = vadd.f32 %v637, %v1028
        %v1030 = vpop.f32.mrb[0].mxu0
        %v1031 = vadd.f32 %v641, %v1030
        %v1032 = vpop.f32.mrb[0].mxu0
        %v1033 = vadd.f32 %v637, %v1032
        %v1034 = vpop.f32.mrb[0].mxu0
        %v1035 = vadd.f32 %v641, %v1034
        %1036 = vmatprep.mubr.bf16.mxu0 %v559
        %1037 = vmatmul.mubr.bf16.gmra.mrb[0].mxu0 %v558
        %v1038 = vpop.f32.mrb[0].mxu0
        %v1039 = vadd.f32 %v637, %v1038
        %v1040 = vpop.f32.mrb[0].mxu0
        %v1041 = vadd.f32 %v641, %v1040
        %v1042 = vpop.f32.mrb[0].mxu0
        %v1043 = vadd.f32 %v637, %v1042
        %v1044 = vpop.f32.mrb[0].mxu0
        %v1045 = vadd.f32 %v641, %v1044
        %1046 = vmatprep.mubr.bf16.mxu0 %v561
        %1047 = vmatmul.mubr.bf16.gmra.mrb[0].mxu0 %v560
        %v1048 = vpop.f32.mrb[0].mxu0
        %v1049 = vadd.f32 %v637, %v1048
        %v1050 = vpop.f32.mrb[0].mxu0
        %v1051 = vadd.f32 %v641, %v1050
        %v1052 = vpop.f32.mrb[0].mxu0
        %v1053 = vadd.f32 %v637, %v1052
        %v1054 = vpop.f32.mrb[0].mxu0
        %v1055 = vadd.f32 %v641, %v1054
        %1056 = vmatprep.mubr.bf16.mxu0 %v563
        %1057 = vmatmul.mubr.bf16.gmra.mrb[0].mxu0 %v562
        %v1058 = vpop.f32.mrb[0].mxu0
        %v1059 = vadd.f32 %v637, %v1058
        %v1060 = vpop.f32.mrb[0].mxu0
        %v1061 = vadd.f32 %v641, %v1060
        %v1062 = vpop.f32.mrb[0].mxu0
        %v1063 = vadd.f32 %v637, %v1062
        %v1064 = vpop.f32.mrb[0].mxu0
        %v1065 = vadd.f32 %v641, %v1064
        %1066 = vmatprep.mubr.bf16.mxu0 %v565
        %1067 = vmatmul.mubr.bf16.gmra.mrb[0].mxu0 %v564
        %v1068 = vpop.f32.mrb[0].mxu0
        %v1069 = vadd.f32 %v637, %v1068
        %v1070 = vpop.f32.mrb[0].mxu0
        %v1071 = vadd.f32 %v641, %v1070
        %v1072 = vpop.f32.mrb[0].mxu0
        %v1073 = vadd.f32 %v637, %v1072
        %v1074 = vpop.f32.mrb[0].mxu0
        %v1075 = vadd.f32 %v641, %v1074
        %1076 = vmatprep.mubr.bf16.mxu0 %v567
        %1077 = vmatmul.mubr.bf16.gmra.mrb[0].mxu0 %v566
        %v1078 = vpop.f32.mrb[0].mxu0
        %v1079 = vadd.f32 %v637, %v1078
        %v1080 = vpop.f32.mrb[0].mxu0
        %v1081 = vadd.f32 %v641, %v1080
        %v1082 = vpop.f32.mrb[0].mxu0
        %v1083 = vadd.f32 %v637, %v1082
        %v1084 = vpop.f32.mrb[0].mxu0
        %v1085 = vadd.f32 %v641, %v1084
        %1086 = vdwg.mxu0
        %1087 = vmatprep.subr.bf16.mxu0 %v849
        %1088 = vmatpush1.bf16.msra.mxu0 %v848
        %1089 = vmatprep.subr.bf16.mxu0 %v853
        %1090 = vmatpush1.bf16.msra.mxu0 %v852
        %1091 = vmatprep.subr.bf16.mxu0 %v857
        %1092 = vmatpush1.bf16.msra.mxu0 %v856
        %1093 = vmatprep.subr.bf16.mxu0 %v861
        %1094 = vmatpush1.bf16.msra.mxu0 %v860
        %1095 = vmatprep.subr.bf16.mxu0 %v865
        %1096 = vmatpush1.bf16.msra.mxu0 %v864
        %1097 = vmatprep.subr.bf16.mxu0 %v869
        %1098 = vmatpush1.bf16.msra.mxu0 %v868
        %1099 = vmatprep.subr.bf16.mxu0 %v873
        %1100 = vmatpush1.bf16.msra.mxu0 %v872
        %1101 = vmatprep.subr.bf16.mxu0 %v877
        %1102 = vmatpush1.bf16.msra.mxu0 %v876
        %1103 = vmatprep.subr.bf16.mxu0 %v881
        %1104 = vmatpush1.bf16.msra.mxu0 %v880
        %1105 = vmatprep.subr.bf16.mxu0 %v885
        %1106 = vmatpush1.bf16.msra.mxu0 %v884
        %1107 = vmatprep.subr.bf16.mxu0 %v889
        %1108 = vmatpush1.bf16.msra.mxu0 %v888
        %1109 = vmatprep.subr.bf16.mxu0 %v893
        %1110 = vmatpush1.bf16.msra.mxu0 %v892
        %1111 = vmatprep.subr.bf16.mxu0 %v897
        %1112 = vmatpush1.bf16.msra.mxu0 %v896
        %1113 = vmatprep.subr.bf16.mxu0 %v901
        %1114 = vmatpush1.bf16.msra.mxu0 %v900
        %1115 = vmatprep.subr.bf16.mxu0 %v905
        %1116 = vmatpush1.bf16.msra.mxu0 %v904
        %1117 = vmatprep.subr.bf16.mxu0 %v909
        %1118 = vmatpush1.bf16.msra.mxu0 %v908
        %1119 = vmatprep.mubr.bf16.mxu0 %v553
        %1120 = vmatmul.mubr.bf16.gmra.mrb[0].mxu0 %v552
        %v1121 = vpop.f32.mrb[0].mxu0
        %v1122 = vadd.f32 %v645, %v1121
        %v1123 = vpop.f32.mrb[0].mxu0
        %v1124 = vadd.f32 %v649, %v1123
        %v1125 = vpop.f32.mrb[0].mxu0
        %v1126 = vadd.f32 %v645, %v1125
        %v1127 = vpop.f32.mrb[0].mxu0
        %v1128 = vadd.f32 %v649, %v1127
        %1129 = vmatprep.mubr.bf16.mxu0 %v555
        %1130 = vmatmul.mubr.bf16.gmra.mrb[0].mxu0 %v554
        %v1131 = vpop.f32.mrb[0].mxu0
        %v1132 = vadd.f32 %v645, %v1131
        %v1133 = vpop.f32.mrb[0].mxu0
        %v1134 = vadd.f32 %v649, %v1133
        %v1135 = vpop.f32.mrb[0].mxu0
        %v1136 = vadd.f32 %v645, %v1135
        %v1137 = vpop.f32.mrb[0].mxu0
        %v1138 = vadd.f32 %v649, %v1137
        %1139 = vmatprep.mubr.bf16.mxu0 %v557
        %1140 = vmatmul.mubr.bf16.gmra.mrb[0].mxu0 %v556
        %v1141 = vpop.f32.mrb[0].mxu0
        %v1142 = vadd.f32 %v645, %v1141
        %v1143 = vpop.f32.mrb[0].mxu0
        %v1144 = vadd.f32 %v649, %v1143
        %v1145 = vpop.f32.mrb[0].mxu0
        %v1146 = vadd.f32 %v645, %v1145
        %v1147 = vpop.f32.mrb[0].mxu0
        %v1148 = vadd.f32 %v649, %v1147
        %1149 = vmatprep.mubr.bf16.mxu0 %v559
        %1150 = vmatmul.mubr.bf16.gmra.mrb[0].mxu0 %v558
        %v1151 = vpop.f32.mrb[0].mxu0
        %v1152 = vadd.f32 %v645, %v1151
        %v1153 = vpop.f32.mrb[0].mxu0
        %v1154 = vadd.f32 %v649, %v1153
        %v1155 = vpop.f32.mrb[0].mxu0
        %v1156 = vadd.f32 %v645, %v1155
        %v1157 = vpop.f32.mrb[0].mxu0
        %v1158 = vadd.f32 %v649, %v1157
        %1159 = vmatprep.mubr.bf16.mxu0 %v561
        %1160 = vmatmul.mubr.bf16.gmra.mrb[0].mxu0 %v560
        %v1161 = vpop.f32.mrb[0].mxu0
        %v1162 = vadd.f32 %v645, %v1161
        %v1163 = vpop.f32.mrb[0].mxu0
        %v1164 = vadd.f32 %v649, %v1163
        %v1165 = vpop.f32.mrb[0].mxu0
        %v1166 = vadd.f32 %v645, %v1165
        %v1167 = vpop.f32.mrb[0].mxu0
        %v1168 = vadd.f32 %v649, %v1167
        %1169 = vmatprep.mubr.bf16.mxu0 %v563
        %1170 = vmatmul.mubr.bf16.gmra.mrb[0].mxu0 %v562
        %v1171 = vpop.f32.mrb[0].mxu0
        %v1172 = vadd.f32 %v645, %v1171
        %v1173 = vpop.f32.mrb[0].mxu0
        %v1174 = vadd.f32 %v649, %v1173
        %v1175 = vpop.f32.mrb[0].mxu0
        %v1176 = vadd.f32 %v645, %v1175
        %v1177 = vpop.f32.mrb[0].mxu0
        %v1178 = vadd.f32 %v649, %v1177
        %1179 = vmatprep.mubr.bf16.mxu0 %v565
        %1180 = vmatmul.mubr.bf16.gmra.mrb[0].mxu0 %v564
        %v1181 = vpop.f32.mrb[0].mxu0
        %v1182 = vadd.f32 %v645, %v1181
        %v1183 = vpop.f32.mrb[0].mxu0
        %v1184 = vadd.f32 %v649, %v1183
        %v1185 = vpop.f32.mrb[0].mxu0
        %v1186 = vadd.f32 %v645, %v1185
        %v1187 = vpop.f32.mrb[0].mxu0
        %v1188 = vadd.f32 %v649, %v1187
        %1189 = vmatprep.mubr.bf16.mxu0 %v567
        %1190 = vmatmul.mubr.bf16.gmra.mrb[0].mxu0 %v566
        %v1191 = vpop.f32.mrb[0].mxu0
        %v1192 = vadd.f32 %v645, %v1191
        %v1193 = vpop.f32.mrb[0].mxu0
        %v1194 = vadd.f32 %v649, %v1193
        %v1195 = vpop.f32.mrb[0].mxu0
        %v1196 = vadd.f32 %v645, %v1195
        %v1197 = vpop.f32.mrb[0].mxu0
        %v1198 = vadd.f32 %v649, %v1197
        %1199 = vdwg.mxu0
        %v1200 = vmax.f32 %v1009, 0.0
        %v1201 = vmax.f32 %v1011, 0.0
        %v1202 = vmax.f32 %v1122, 0.0
        %v1203 = vmax.f32 %v1124, 0.0
        %v1204 = vmax.f32 %v1013, 0.0
        %v1205 = vmax.f32 %v1015, 0.0
        %v1206 = vmax.f32 %v1126, 0.0
        %v1207 = vmax.f32 %v1128, 0.0
        %v1208 = vmax.f32 %v1019, 0.0
        %v1209 = vmax.f32 %v1021, 0.0
        %v1210 = vmax.f32 %v1132, 0.0
        %v1211 = vmax.f32 %v1134, 0.0
        %v1212 = vmax.f32 %v1023, 0.0
        %v1213 = vmax.f32 %v1025, 0.0
        %v1214 = vmax.f32 %v1136, 0.0
        %v1215 = vmax.f32 %v1138, 0.0
        %v1216 = vmax.f32 %v1029, 0.0
        %v1217 = vmax.f32 %v1031, 0.0
        %v1218 = vmax.f32 %v1142, 0.0
        %v1219 = vmax.f32 %v1144, 0.0
        %v1220 = vmax.f32 %v1033, 0.0
        %v1221 = vmax.f32 %v1035, 0.0
        %v1222 = vmax.f32 %v1146, 0.0
        %v1223 = vmax.f32 %v1148, 0.0
        %v1224 = vmax.f32 %v1039, 0.0
        %v1225 = vmax.f32 %v1041, 0.0
        %v1226 = vmax.f32 %v1152, 0.0
        %v1227 = vmax.f32 %v1154, 0.0
        %v1228 = vmax.f32 %v1043, 0.0
        %v1229 = vmax.f32 %v1045, 0.0
        %v1230 = vmax.f32 %v1156, 0.0
        %v1231 = vmax.f32 %v1158, 0.0
        %v1232 = vmax.f32 %v1049, 0.0
        %v1233 = vmax.f32 %v1051, 0.0
        %v1234 = vmax.f32 %v1162, 0.0
        %v1235 = vmax.f32 %v1164, 0.0
        %v1236 = vmax.f32 %v1053, 0.0
        %v1237 = vmax.f32 %v1055, 0.0
        %v1238 = vmax.f32 %v1166, 0.0
        %v1239 = vmax.f32 %v1168, 0.0
        %v1240 = vmax.f32 %v1059, 0.0
        %v1241 = vmax.f32 %v1061, 0.0
        %v1242 = vmax.f32 %v1172, 0.0
        %v1243 = vmax.f32 %v1174, 0.0
        %v1244 = vmax.f32 %v1063, 0.0
        %v1245 = vmax.f32 %v1065, 0.0
        %v1246 = vmax.f32 %v1176, 0.0
        %v1247 = vmax.f32 %v1178, 0.0
        %v1248 = vmax.f32 %v1069, 0.0
        %v1249 = vmax.f32 %v1071, 0.0
        %v1250 = vmax.f32 %v1182, 0.0
        %v1251 = vmax.f32 %v1184, 0.0
        %v1252 = vmax.f32 %v1073, 0.0
        %v1253 = vmax.f32 %v1075, 0.0
        %v1254 = vmax.f32 %v1186, 0.0
        %v1255 = vmax.f32 %v1188, 0.0
        %v1256 = vmax.f32 %v1079, 0.0
        %v1257 = vmax.f32 %v1081, 0.0
        %v1258 = vmax.f32 %v1192, 0.0
        %v1259 = vmax.f32 %v1194, 0.0
        %v1260 = vmax.f32 %v1083, 0.0
        %v1261 = vmax.f32 %v1085, 0.0
        %v1262 = vmax.f32 %v1196, 0.0
        %v1263 = vmax.f32 %v1198, 0.0
        %v1264 = vpack.c.bf16 %v1204, %v1200
        %v1265 = vpack.c.bf16 %v1205, %v1201
        %v1266 = vpack.c.bf16 %v1206, %v1202
        %v1267 = vpack.c.bf16 %v1207, %v1203
        %v1268 = vpack.c.bf16 %v1212, %v1208
        %v1269 = vpack.c.bf16 %v1213, %v1209
        %v1270 = vpack.c.bf16 %v1214, %v1210
        %v1271 = vpack.c.bf16 %v1215, %v1211
        %v1272 = vpack.c.bf16 %v1220, %v1216
        %v1273 = vpack.c.bf16 %v1221, %v1217
        %v1274 = vpack.c.bf16 %v1222, %v1218
        %v1275 = vpack.c.bf16 %v1223, %v1219
        %v1276 = vpack.c.bf16 %v1228, %v1224
        %v1277 = vpack.c.bf16 %v1229, %v1225
        %v1278 = vpack.c.bf16 %v1230, %v1226
        %v1279 = vpack.c.bf16 %v1231, %v1227
        %v1280 = vpack.c.bf16 %v1236, %v1232
        %v1281 = vpack.c.bf16 %v1237, %v1233
        %v1282 = vpack.c.bf16 %v1238, %v1234
        %v1283 = vpack.c.bf16 %v1239, %v1235
        %v1284 = vpack.c.bf16 %v1244, %v1240
        %v1285 = vpack.c.bf16 %v1245, %v1241
        %v1286 = vpack.c.bf16 %v1246, %v1242
        %v1287 = vpack.c.bf16 %v1247, %v1243
        %v1288 = vpack.c.bf16 %v1252, %v1248
        %v1289 = vpack.c.bf16 %v1253, %v1249
        %v1290 = vpack.c.bf16 %v1254, %v1250
        %v1291 = vpack.c.bf16 %v1255, %v1251
        %v1292 = vpack.c.bf16 %v1260, %v1256
        %v1293 = vpack.c.bf16 %v1261, %v1257
        %v1294 = vpack.c.bf16 %v1262, %v1258
        %v1295 = vpack.c.bf16 %v1263, %v1259
        %v1296 = vld [vmem:[%s449] sm:$0xff]
        %v1297 = vld [vmem:[%s449 + $0x8] sm:$0xff]
        %v1298 = vld [vmem:[%s449 + $0x10] sm:$0xff]
        %v1299 = vld [vmem:[%s449 + $0x18] sm:$0xff]
        %v1300 = vld [vmem:[%s449 + $0x20] sm:$0xff]
        %v1301 = vld [vmem:[%s449 + $0x28] sm:$0xff]
        %v1302 = vld [vmem:[%s449 + $0x30] sm:$0xff]
        %v1303 = vld [vmem:[%s449 + $0x38] sm:$0xff]
        %v1304 = vld [vmem:[%s449 + $0x40] sm:$0xff]
        %v1305 = vld [vmem:[%s449 + $0x48] sm:$0xff]
        %v1306 = vld [vmem:[%s449 + $0x50] sm:$0xff]
        %v1307 = vld [vmem:[%s449 + $0x58] sm:$0xff]
        %v1308 = vld [vmem:[%s449 + $0x60] sm:$0xff]
        %v1309 = vld [vmem:[%s449 + $0x68] sm:$0xff]
        %v1310 = vld [vmem:[%s449 + $0x70] sm:$0xff]
        %v1311 = vld [vmem:[%s449 + $0x78] sm:$0xff]
        %v1312 = vld [vmem:[%s449 + $0x80] sm:$0xff]
        %v1313 = vld [vmem:[%s449 + $0x88] sm:$0xff]
        %v1314 = vld [vmem:[%s449 + $0x90] sm:$0xff]
        %v1315 = vld [vmem:[%s449 + $0x98] sm:$0xff]
        %v1316 = vld [vmem:[%s449 + $0xa0] sm:$0xff]
        %v1317 = vld [vmem:[%s449 + $0xa8] sm:$0xff]
        %v1318 = vld [vmem:[%s449 + $0xb0] sm:$0xff]
        %v1319 = vld [vmem:[%s449 + $0xb8] sm:$0xff]
        %v1320 = vld [vmem:[%s449 + $0xc0] sm:$0xff]
        %v1321 = vld [vmem:[%s449 + $0xc8] sm:$0xff]
        %v1322 = vld [vmem:[%s449 + $0xd0] sm:$0xff]
        %v1323 = vld [vmem:[%s449 + $0xd8] sm:$0xff]
        %v1324 = vld [vmem:[%s449 + $0xe0] sm:$0xff]
        %v1325 = vld [vmem:[%s449 + $0xe8] sm:$0xff]
        %v1326 = vld [vmem:[%s449 + $0xf0] sm:$0xff]
        %v1327 = vld [vmem:[%s449 + $0xf8] sm:$0xff]
        %v1328 = vld [vmem:[%s449 + $0x100] sm:$0xff]
        %v1329 = vld [vmem:[%s449 + $0x108] sm:$0xff]
        %v1330 = vld [vmem:[%s449 + $0x110] sm:$0xff]
        %v1331 = vld [vmem:[%s449 + $0x118] sm:$0xff]
        %v1332 = vld [vmem:[%s449 + $0x120] sm:$0xff]
        %v1333 = vld [vmem:[%s449 + $0x128] sm:$0xff]
        %v1334 = vld [vmem:[%s449 + $0x130] sm:$0xff]
        %v1335 = vld [vmem:[%s449 + $0x138] sm:$0xff]
        %v1336 = vld [vmem:[%s449 + $0x140] sm:$0xff]
        %v1337 = vld [vmem:[%s449 + $0x148] sm:$0xff]
        %v1338 = vld [vmem:[%s449 + $0x150] sm:$0xff]
        %v1339 = vld [vmem:[%s449 + $0x158] sm:$0xff]
        %v1340 = vld [vmem:[%s449 + $0x160] sm:$0xff]
        %v1341 = vld [vmem:[%s449 + $0x168] sm:$0xff]
        %v1342 = vld [vmem:[%s449 + $0x170] sm:$0xff]
        %v1343 = vld [vmem:[%s449 + $0x178] sm:$0xff]
        %v1344 = vld [vmem:[%s449 + $0x180] sm:$0xff]
        %v1345 = vld [vmem:[%s449 + $0x188] sm:$0xff]
        %v1346 = vld [vmem:[%s449 + $0x190] sm:$0xff]
        %v1347 = vld [vmem:[%s449 + $0x198] sm:$0xff]
        %v1348 = vld [vmem:[%s449 + $0x1a0] sm:$0xff]
        %v1349 = vld [vmem:[%s449 + $0x1a8] sm:$0xff]
        %v1350 = vld [vmem:[%s449 + $0x1b0] sm:$0xff]
        %v1351 = vld [vmem:[%s449 + $0x1b8] sm:$0xff]
        %v1352 = vld [vmem:[%s449 + $0x1c0] sm:$0xff]
        %v1353 = vld [vmem:[%s449 + $0x1c8] sm:$0xff]
        %v1354 = vld [vmem:[%s449 + $0x1d0] sm:$0xff]
        %v1355 = vld [vmem:[%s449 + $0x1d8] sm:$0xff]
        %v1356 = vld [vmem:[%s449 + $0x1e0] sm:$0xff]
        %v1357 = vld [vmem:[%s449 + $0x1e8] sm:$0xff]
        %v1358 = vld [vmem:[%s449 + $0x1f0] sm:$0xff]
        %v1359 = vld [vmem:[%s449 + $0x1f8] sm:$0xff]
        %v1424 = vunpack.c.l.b16 %v1296
        %v1425 = vunpack.c.h.b16 %v1296
        %v1426 = vunpack.c.l.b16 %v1297
        %v1427 = vunpack.c.h.b16 %v1297
        %v1428 = vunpack.c.l.b16 %v1298
        %v1429 = vunpack.c.h.b16 %v1298
        %v1430 = vunpack.c.l.b16 %v1299
        %v1431 = vunpack.c.h.b16 %v1299
        %v1432 = vunpack.c.l.b16 %v1300
        %v1433 = vunpack.c.h.b16 %v1300
        %v1434 = vunpack.c.l.b16 %v1301
        %v1435 = vunpack.c.h.b16 %v1301
        %v1436 = vunpack.c.l.b16 %v1302
        %v1437 = vunpack.c.h.b16 %v1302
        %v1438 = vunpack.c.l.b16 %v1303
        %v1439 = vunpack.c.h.b16 %v1303
        %v1440 = vunpack.c.l.b16 %v1304
        %v1441 = vunpack.c.h.b16 %v1304
        %v1442 = vunpack.c.l.b16 %v1305
        %v1443 = vunpack.c.h.b16 %v1305
        %v1444 = vunpack.c.l.b16 %v1306
        %v1445 = vunpack.c.h.b16 %v1306
        %v1446 = vunpack.c.l.b16 %v1307
        %v1447 = vunpack.c.h.b16 %v1307
        %v1448 = vunpack.c.l.b16 %v1308
        %v1449 = vunpack.c.h.b16 %v1308
        %v1450 = vunpack.c.l.b16 %v1309
        %v1451 = vunpack.c.h.b16 %v1309
        %v1452 = vunpack.c.l.b16 %v1310
        %v1453 = vunpack.c.h.b16 %v1310
        %v1454 = vunpack.c.l.b16 %v1311
        %v1455 = vunpack.c.h.b16 %v1311
        %v1456 = vunpack.c.l.b16 %v1312
        %v1457 = vunpack.c.h.b16 %v1312
        %v1458 = vunpack.c.l.b16 %v1313
        %v1459 = vunpack.c.h.b16 %v1313
        %v1460 = vunpack.c.l.b16 %v1314
        %v1461 = vunpack.c.h.b16 %v1314
        %v1462 = vunpack.c.l.b16 %v1315
        %v1463 = vunpack.c.h.b16 %v1315
        %v1464 = vunpack.c.l.b16 %v1316
        %v1465 = vunpack.c.h.b16 %v1316
        %v1466 = vunpack.c.l.b16 %v1317
        %v1467 = vunpack.c.h.b16 %v1317
        %v1468 = vunpack.c.l.b16 %v1318
        %v1469 = vunpack.c.h.b16 %v1318
        %v1470 = vunpack.c.l.b16 %v1319
        %v1471 = vunpack.c.h.b16 %v1319
        %v1472 = vunpack.c.l.b16 %v1320
        %v1473 = vunpack.c.h.b16 %v1320
        %v1474 = vunpack.c.l.b16 %v1321
        %v1475 = vunpack.c.h.b16 %v1321
        %v1476 = vunpack.c.l.b16 %v1322
        %v1477 = vunpack.c.h.b16 %v1322
        %v1478 = vunpack.c.l.b16 %v1323
        %v1479 = vunpack.c.h.b16 %v1323
        %v1480 = vunpack.c.l.b16 %v1324
        %v1481 = vunpack.c.h.b16 %v1324
        %v1482 = vunpack.c.l.b16 %v1325
        %v1483 = vunpack.c.h.b16 %v1325
        %v1484 = vunpack.c.l.b16 %v1326
        %v1485 = vunpack.c.h.b16 %v1326
        %v1486 = vunpack.c.l.b16 %v1327
        %v1487 = vunpack.c.h.b16 %v1327
        %v1488 = vunpack.c.l.b16 %v1328
        %v1489 = vunpack.c.h.b16 %v1328
        %v1490 = vunpack.c.l.b16 %v1329
        %v1491 = vunpack.c.h.b16 %v1329
        %v1492 = vunpack.c.l.b16 %v1330
        %v1493 = vunpack.c.h.b16 %v1330
        %v1494 = vunpack.c.l.b16 %v1331
        %v1495 = vunpack.c.h.b16 %v1331
        %v1496 = vunpack.c.l.b16 %v1332
        %v1497 = vunpack.c.h.b16 %v1332
        %v1498 = vunpack.c.l.b16 %v1333
        %v1499 = vunpack.c.h.b16 %v1333
        %v1500 = vunpack.c.l.b16 %v1334
        %v1501 = vunpack.c.h.b16 %v1334
        %v1502 = vunpack.c.l.b16 %v1335
        %v1503 = vunpack.c.h.b16 %v1335
        %v1504 = vunpack.c.l.b16 %v1336
        %v1505 = vunpack.c.h.b16 %v1336
        %v1506 = vunpack.c.l.b16 %v1337
        %v1507 = vunpack.c.h.b16 %v1337
        %v1508 = vunpack.c.l.b16 %v1338
        %v1509 = vunpack.c.h.b16 %v1338
        %v1510 = vunpack.c.l.b16 %v1339
        %v1511 = vunpack.c.h.b16 %v1339
        %v1512 = vunpack.c.l.b16 %v1340
        %v1513 = vunpack.c.h.b16 %v1340
        %v1514 = vunpack.c.l.b16 %v1341
        %v1515 = vunpack.c.h.b16 %v1341
        %v1516 = vunpack.c.l.b16 %v1342
        %v1517 = vunpack.c.h.b16 %v1342
        %v1518 = vunpack.c.l.b16 %v1343
        %v1519 = vunpack.c.h.b16 %v1343
        %v1520 = vunpack.c.l.b16 %v1344
        %v1521 = vunpack.c.h.b16 %v1344
        %v1522 = vunpack.c.l.b16 %v1345
        %v1523 = vunpack.c.h.b16 %v1345
        %v1524 = vunpack.c.l.b16 %v1346
        %v1525 = vunpack.c.h.b16 %v1346
        %v1526 = vunpack.c.l.b16 %v1347
        %v1527 = vunpack.c.h.b16 %v1347
        %v1528 = vunpack.c.l.b16 %v1348
        %v1529 = vunpack.c.h.b16 %v1348
        %v1530 = vunpack.c.l.b16 %v1349
        %v1531 = vunpack.c.h.b16 %v1349
        %v1532 = vunpack.c.l.b16 %v1350
        %v1533 = vunpack.c.h.b16 %v1350
        %v1534 = vunpack.c.l.b16 %v1351
        %v1535 = vunpack.c.h.b16 %v1351
        %v1536 = vunpack.c.l.b16 %v1352
        %v1537 = vunpack.c.h.b16 %v1352
        %v1538 = vunpack.c.l.b16 %v1353
        %v1539 = vunpack.c.h.b16 %v1353
        %v1540 = vunpack.c.l.b16 %v1354
        %v1541 = vunpack.c.h.b16 %v1354
        %v1542 = vunpack.c.l.b16 %v1355
        %v1543 = vunpack.c.h.b16 %v1355
        %v1544 = vunpack.c.l.b16 %v1356
        %v1545 = vunpack.c.h.b16 %v1356
        %v1546 = vunpack.c.l.b16 %v1357
        %v1547 = vunpack.c.h.b16 %v1357
        %v1548 = vunpack.c.l.b16 %v1358
        %v1549 = vunpack.c.h.b16 %v1358
        %v1550 = vunpack.c.l.b16 %v1359
        %v1551 = vunpack.c.h.b16 %v1359
        %v1552 = vpack.c.b16 %v1426, %v1424
        %v1553 = vpack.c.b16 %v1427, %v1425
        %v1554 = vpack.c.b16 %v1430, %v1428
        %v1555 = vpack.c.b16 %v1431, %v1429
        %v1556 = vpack.c.b16 %v1434, %v1432
        %v1557 = vpack.c.b16 %v1435, %v1433
        %v1558 = vpack.c.b16 %v1438, %v1436
        %v1559 = vpack.c.b16 %v1439, %v1437
        %v1560 = vpack.c.b16 %v1442, %v1440
        %v1561 = vpack.c.b16 %v1443, %v1441
        %v1562 = vpack.c.b16 %v1446, %v1444
        %v1563 = vpack.c.b16 %v1447, %v1445
        %v1564 = vpack.c.b16 %v1450, %v1448
        %v1565 = vpack.c.b16 %v1451, %v1449
        %v1566 = vpack.c.b16 %v1454, %v1452
        %v1567 = vpack.c.b16 %v1455, %v1453
        %v1568 = vpack.c.b16 %v1458, %v1456
        %v1569 = vpack.c.b16 %v1459, %v1457
        %v1570 = vpack.c.b16 %v1462, %v1460
        %v1571 = vpack.c.b16 %v1463, %v1461
        %v1572 = vpack.c.b16 %v1466, %v1464
        %v1573 = vpack.c.b16 %v1467, %v1465
        %v1574 = vpack.c.b16 %v1470, %v1468
        %v1575 = vpack.c.b16 %v1471, %v1469
        %v1576 = vpack.c.b16 %v1474, %v1472
        %v1577 = vpack.c.b16 %v1475, %v1473
        %v1578 = vpack.c.b16 %v1478, %v1476
        %v1579 = vpack.c.b16 %v1479, %v1477
        %v1580 = vpack.c.b16 %v1482, %v1480
        %v1581 = vpack.c.b16 %v1483, %v1481
        %v1582 = vpack.c.b16 %v1486, %v1484
        %v1583 = vpack.c.b16 %v1487, %v1485
        %v1584 = vpack.c.b16 %v1490, %v1488
        %v1585 = vpack.c.b16 %v1491, %v1489
        %v1586 = vpack.c.b16 %v1494, %v1492
        %v1587 = vpack.c.b16 %v1495, %v1493
        %v1588 = vpack.c.b16 %v1498, %v1496
        %v1589 = vpack.c.b16 %v1499, %v1497
        %v1590 = vpack.c.b16 %v1502, %v1500
        %v1591 = vpack.c.b16 %v1503, %v1501
        %v1592 = vpack.c.b16 %v1506, %v1504
        %v1593 = vpack.c.b16 %v1507, %v1505
        %v1594 = vpack.c.b16 %v1510, %v1508
        %v1595 = vpack.c.b16 %v1511, %v1509
        %v1596 = vpack.c.b16 %v1514, %v1512
        %v1597 = vpack.c.b16 %v1515, %v1513
        %v1598 = vpack.c.b16 %v1518, %v1516
        %v1599 = vpack.c.b16 %v1519, %v1517
        %v1600 = vpack.c.b16 %v1522, %v1520
        %v1601 = vpack.c.b16 %v1523, %v1521
        %v1602 = vpack.c.b16 %v1526, %v1524
        %v1603 = vpack.c.b16 %v1527, %v1525
        %v1604 = vpack.c.b16 %v1530, %v1528
        %v1605 = vpack.c.b16 %v1531, %v1529
        %v1606 = vpack.c.b16 %v1534, %v1532
        %v1607 = vpack.c.b16 %v1535, %v1533
        %v1608 = vpack.c.b16 %v1538, %v1536
        %v1609 = vpack.c.b16 %v1539, %v1537
        %v1610 = vpack.c.b16 %v1542, %v1540
        %v1611 = vpack.c.b16 %v1543, %v1541
        %v1612 = vpack.c.b16 %v1546, %v1544
        %v1613 = vpack.c.b16 %v1547, %v1545
        %v1614 = vpack.c.b16 %v1550, %v1548
        %v1615 = vpack.c.b16 %v1551, %v1549
        %1680 = vmatprep.subr.bf16.mxu0 %v1553
        %1681 = vmatpush1.bf16.msra.mxu0 %v1552
        %1682 = vmatprep.subr.bf16.mxu0 %v1555
        %1683 = vmatpush1.bf16.msra.mxu0 %v1554
        %1684 = vmatprep.subr.bf16.mxu0 %v1557
        %1685 = vmatpush1.bf16.msra.mxu0 %v1556
        %1686 = vmatprep.subr.bf16.mxu0 %v1559
        %1687 = vmatpush1.bf16.msra.mxu0 %v1558
        %1688 = vmatprep.subr.bf16.mxu0 %v1561
        %1689 = vmatpush1.bf16.msra.mxu0 %v1560
        %1690 = vmatprep.subr.bf16.mxu0 %v1563
        %1691 = vmatpush1.bf16.msra.mxu0 %v1562
        %1692 = vmatprep.subr.bf16.mxu0 %v1565
        %1693 = vmatpush1.bf16.msra.mxu0 %v1564
        %1694 = vmatprep.subr.bf16.mxu0 %v1567
        %1695 = vmatpush1.bf16.msra.mxu0 %v1566
        %1696 = vmatprep.subr.bf16.mxu0 %v1569
        %1697 = vmatpush1.bf16.msra.mxu0 %v1568
        %1698 = vmatprep.subr.bf16.mxu0 %v1571
        %1699 = vmatpush1.bf16.msra.mxu0 %v1570
        %1700 = vmatprep.subr.bf16.mxu0 %v1573
        %1701 = vmatpush1.bf16.msra.mxu0 %v1572
        %1702 = vmatprep.subr.bf16.mxu0 %v1575
        %1703 = vmatpush1.bf16.msra.mxu0 %v1574
        %1704 = vmatprep.subr.bf16.mxu0 %v1577
        %1705 = vmatpush1.bf16.msra.mxu0 %v1576
        %1706 = vmatprep.subr.bf16.mxu0 %v1579
        %1707 = vmatpush1.bf16.msra.mxu0 %v1578
        %1708 = vmatprep.subr.bf16.mxu0 %v1581
        %1709 = vmatpush1.bf16.msra.mxu0 %v1580
        %1710 = vmatprep.subr.bf16.mxu0 %v1583
        %1711 = vmatpush1.bf16.msra.mxu0 %v1582
        %1712 = vmatprep.mubr.bf16.mxu0 %v1265
        %1713 = vmatmul.mubr.bf16.gmra.mrb[0].mxu0 %v1264
        %v1714 = vpop.f32.mrb[0].mxu0
        %v1715 = vadd.f32 0.0, %v1714
        %v1716 = vpop.f32.mrb[0].mxu0
        %v1717 = vadd.f32 0.0, %v1716
        %v1718 = vpop.f32.mrb[0].mxu0
        %v1719 = vadd.f32 0.0, %v1718
        %v1720 = vpop.f32.mrb[0].mxu0
        %v1721 = vadd.f32 0.0, %v1720
        %1722 = vmatprep.mubr.bf16.mxu0 %v1269
        %1723 = vmatmul.mubr.bf16.gmra.mrb[0].mxu0 %v1268
        %v1724 = vpop.f32.mrb[0].mxu0
        %v1725 = vadd.f32 0.0, %v1724
        %v1726 = vpop.f32.mrb[0].mxu0
        %v1727 = vadd.f32 0.0, %v1726
        %v1728 = vpop.f32.mrb[0].mxu0
        %v1729 = vadd.f32 0.0, %v1728
        %v1730 = vpop.f32.mrb[0].mxu0
        %v1731 = vadd.f32 0.0, %v1730
        %1732 = vmatprep.mubr.bf16.mxu0 %v1273
        %1733 = vmatmul.mubr.bf16.gmra.mrb[0].mxu0 %v1272
        %v1734 = vpop.f32.mrb[0].mxu0
        %v1735 = vadd.f32 0.0, %v1734
        %v1736 = vpop.f32.mrb[0].mxu0
        %v1737 = vadd.f32 0.0, %v1736
        %v1738 = vpop.f32.mrb[0].mxu0
        %v1739 = vadd.f32 0.0, %v1738
        %v1740 = vpop.f32.mrb[0].mxu0
        %v1741 = vadd.f32 0.0, %v1740
        %1742 = vmatprep.mubr.bf16.mxu0 %v1277
        %1743 = vmatmul.mubr.bf16.gmra.mrb[0].mxu0 %v1276
        %v1744 = vpop.f32.mrb[0].mxu0
        %v1745 = vadd.f32 0.0, %v1744
        %v1746 = vpop.f32.mrb[0].mxu0
        %v1747 = vadd.f32 0.0, %v1746
        %v1748 = vpop.f32.mrb[0].mxu0
        %v1749 = vadd.f32 0.0, %v1748
        %v1750 = vpop.f32.mrb[0].mxu0
        %v1751 = vadd.f32 0.0, %v1750
        %1752 = vmatprep.mubr.bf16.mxu0 %v1281
        %1753 = vmatmul.mubr.bf16.gmra.mrb[0].mxu0 %v1280
        %v1754 = vpop.f32.mrb[0].mxu0
        %v1755 = vadd.f32 0.0, %v1754
        %v1756 = vpop.f32.mrb[0].mxu0
        %v1757 = vadd.f32 0.0, %v1756
        %v1758 = vpop.f32.mrb[0].mxu0
        %v1759 = vadd.f32 0.0, %v1758
        %v1760 = vpop.f32.mrb[0].mxu0
        %v1761 = vadd.f32 0.0, %v1760
        %1762 = vmatprep.mubr.bf16.mxu0 %v1285
        %1763 = vmatmul.mubr.bf16.gmra.mrb[0].mxu0 %v1284
        %v1764 = vpop.f32.mrb[0].mxu0
        %v1765 = vadd.f32 0.0, %v1764
        %v1766 = vpop.f32.mrb[0].mxu0
        %v1767 = vadd.f32 0.0, %v1766
        %v1768 = vpop.f32.mrb[0].mxu0
        %v1769 = vadd.f32 0.0, %v1768
        %v1770 = vpop.f32.mrb[0].mxu0
        %v1771 = vadd.f32 0.0, %v1770
        %1772 = vmatprep.mubr.bf16.mxu0 %v1289
        %1773 = vmatmul.mubr.bf16.gmra.mrb[0].mxu0 %v1288
        %v1774 = vpop.f32.mrb[0].mxu0
        %v1775 = vadd.f32 0.0, %v1774
        %v1776 = vpop.f32.mrb[0].mxu0
        %v1777 = vadd.f32 0.0, %v1776
        %v1778 = vpop.f32.mrb[0].mxu0
        %v1779 = vadd.f32 0.0, %v1778
        %v1780 = vpop.f32.mrb[0].mxu0
        %v1781 = vadd.f32 0.0, %v1780
        %1782 = vmatprep.mubr.bf16.mxu0 %v1293
        %1783 = vmatmul.mubr.bf16.gmra.mrb[0].mxu0 %v1292
        %v1784 = vpop.f32.mrb[0].mxu0
        %v1785 = vadd.f32 0.0, %v1784
        %v1786 = vpop.f32.mrb[0].mxu0
        %v1787 = vadd.f32 0.0, %v1786
        %v1788 = vpop.f32.mrb[0].mxu0
        %v1789 = vadd.f32 0.0, %v1788
        %v1790 = vpop.f32.mrb[0].mxu0
        %v1791 = vadd.f32 0.0, %v1790
        %1792 = vdwg.mxu0
        %1793 = vmatprep.subr.bf16.mxu0 %v1585
        %1794 = vmatpush1.bf16.msra.mxu0 %v1584
        %1795 = vmatprep.subr.bf16.mxu0 %v1587
        %1796 = vmatpush1.bf16.msra.mxu0 %v1586
        %1797 = vmatprep.subr.bf16.mxu0 %v1589
        %1798 = vmatpush1.bf16.msra.mxu0 %v1588
        %1799 = vmatprep.subr.bf16.mxu0 %v1591
        %1800 = vmatpush1.bf16.msra.mxu0 %v1590
        %1801 = vmatprep.subr.bf16.mxu0 %v1593
        %1802 = vmatpush1.bf16.msra.mxu0 %v1592
        %1803 = vmatprep.subr.bf16.mxu0 %v1595
        %1804 = vmatpush1.bf16.msra.mxu0 %v1594
        %1805 = vmatprep.subr.bf16.mxu0 %v1597
        %1806 = vmatpush1.bf16.msra.mxu0 %v1596
        %1807 = vmatprep.subr.bf16.mxu0 %v1599
        %1808 = vmatpush1.bf16.msra.mxu0 %v1598
        %1809 = vmatprep.subr.bf16.mxu0 %v1601
        %1810 = vmatpush1.bf16.msra.mxu0 %v1600
        %1811 = vmatprep.subr.bf16.mxu0 %v1603
        %1812 = vmatpush1.bf16.msra.mxu0 %v1602
        %1813 = vmatprep.subr.bf16.mxu0 %v1605
        %1814 = vmatpush1.bf16.msra.mxu0 %v1604
        %1815 = vmatprep.subr.bf16.mxu0 %v1607
        %1816 = vmatpush1.bf16.msra.mxu0 %v1606
        %1817 = vmatprep.subr.bf16.mxu0 %v1609
        %1818 = vmatpush1.bf16.msra.mxu0 %v1608
        %1819 = vmatprep.subr.bf16.mxu0 %v1611
        %1820 = vmatpush1.bf16.msra.mxu0 %v1610
        %1821 = vmatprep.subr.bf16.mxu0 %v1613
        %1822 = vmatpush1.bf16.msra.mxu0 %v1612
        %1823 = vmatprep.subr.bf16.mxu0 %v1615
        %1824 = vmatpush1.bf16.msra.mxu0 %v1614
        %1825 = vmatprep.mubr.bf16.mxu0 %v1267
        %1826 = vmatmul.mubr.bf16.gmra.mrb[0].mxu0 %v1266
        %v1827 = vpop.f32.mrb[0].mxu0
        %v1828 = vadd.f32 %v1715, %v1827
        %v1829 = vpop.f32.mrb[0].mxu0
        %v1830 = vadd.f32 %v1717, %v1829
        %v1831 = vpop.f32.mrb[0].mxu0
        %v1832 = vadd.f32 %v1719, %v1831
        %v1833 = vpop.f32.mrb[0].mxu0
        %v1834 = vadd.f32 %v1721, %v1833
        %1835 = vmatprep.mubr.bf16.mxu0 %v1271
        %1836 = vmatmul.mubr.bf16.gmra.mrb[0].mxu0 %v1270
        %v1837 = vpop.f32.mrb[0].mxu0
        %v1838 = vadd.f32 %v1725, %v1837
        %v1839 = vpop.f32.mrb[0].mxu0
        %v1840 = vadd.f32 %v1727, %v1839
        %v1841 = vpop.f32.mrb[0].mxu0
        %v1842 = vadd.f32 %v1729, %v1841
        %v1843 = vpop.f32.mrb[0].mxu0
        %v1844 = vadd.f32 %v1731, %v1843
        %1845 = vmatprep.mubr.bf16.mxu0 %v1275
        %1846 = vmatmul.mubr.bf16.gmra.mrb[0].mxu0 %v1274
        %v1847 = vpop.f32.mrb[0].mxu0
        %v1848 = vadd.f32 %v1735, %v1847
        %v1849 = vpop.f32.mrb[0].mxu0
        %v1850 = vadd.f32 %v1737, %v1849
        %v1851 = vpop.f32.mrb[0].mxu0
        %v1852 = vadd.f32 %v1739, %v1851
        %v1853 = vpop.f32.mrb[0].mxu0
        %v1854 = vadd.f32 %v1741, %v1853
        %1855 = vmatprep.mubr.bf16.mxu0 %v1279
        %1856 = vmatmul.mubr.bf16.gmra.mrb[0].mxu0 %v1278
        %v1857 = vpop.f32.mrb[0].mxu0
        %v1858 = vadd.f32 %v1745, %v1857
        %v1859 = vpop.f32.mrb[0].mxu0
        %v1860 = vadd.f32 %v1747, %v1859
        %v1861 = vpop.f32.mrb[0].mxu0
        %v1862 = vadd.f32 %v1749, %v1861
        %v1863 = vpop.f32.mrb[0].mxu0
        %v1864 = vadd.f32 %v1751, %v1863
        %1865 = vmatprep.mubr.bf16.mxu0 %v1283
        %1866 = vmatmul.mubr.bf16.gmra.mrb[0].mxu0 %v1282
        %v1867 = vpop.f32.mrb[0].mxu0
        %v1868 = vadd.f32 %v1755, %v1867
        %v1869 = vpop.f32.mrb[0].mxu0
        %v1870 = vadd.f32 %v1757, %v1869
        %v1871 = vpop.f32.mrb[0].mxu0
        %v1872 = vadd.f32 %v1759, %v1871
        %v1873 = vpop.f32.mrb[0].mxu0
        %v1874 = vadd.f32 %v1761, %v1873
        %1875 = vmatprep.mubr.bf16.mxu0 %v1287
        %1876 = vmatmul.mubr.bf16.gmra.mrb[0].mxu0 %v1286
        %v1877 = vpop.f32.mrb[0].mxu0
        %v1878 = vadd.f32 %v1765, %v1877
        %v1879 = vpop.f32.mrb[0].mxu0
        %v1880 = vadd.f32 %v1767, %v1879
        %v1881 = vpop.f32.mrb[0].mxu0
        %v1882 = vadd.f32 %v1769, %v1881
        %v1883 = vpop.f32.mrb[0].mxu0
        %v1884 = vadd.f32 %v1771, %v1883
        %1885 = vmatprep.mubr.bf16.mxu0 %v1291
        %1886 = vmatmul.mubr.bf16.gmra.mrb[0].mxu0 %v1290
        %v1887 = vpop.f32.mrb[0].mxu0
        %v1888 = vadd.f32 %v1775, %v1887
        %v1889 = vpop.f32.mrb[0].mxu0
        %v1890 = vadd.f32 %v1777, %v1889
        %v1891 = vpop.f32.mrb[0].mxu0
        %v1892 = vadd.f32 %v1779, %v1891
        %v1893 = vpop.f32.mrb[0].mxu0
        %v1894 = vadd.f32 %v1781, %v1893
        %1895 = vmatprep.mubr.bf16.mxu0 %v1295
        %1896 = vmatmul.mubr.bf16.gmra.mrb[0].mxu0 %v1294
        %v1897 = vpop.f32.mrb[0].mxu0
        %v1898 = vadd.f32 %v1785, %v1897
        %v1899 = vpop.f32.mrb[0].mxu0
        %v1900 = vadd.f32 %v1787, %v1899
        %v1901 = vpop.f32.mrb[0].mxu0
        %v1902 = vadd.f32 %v1789, %v1901
        %v1903 = vpop.f32.mrb[0].mxu0
        %v1904 = vadd.f32 %v1791, %v1903
        %1905 = vdwg.mxu0
        %v1906 = vadd.f32 %v520, %v1828
        %v1907 = vadd.f32 %v521, %v1830
        %v1908 = vadd.f32 %v522, %v1832
        %v1909 = vadd.f32 %v523, %v1834
        %v1910 = vadd.f32 %v524, %v1838
        %v1911 = vadd.f32 %v525, %v1840
        %v1912 = vadd.f32 %v526, %v1842
        %v1913 = vadd.f32 %v527, %v1844
        %v1914 = vadd.f32 %v528, %v1848
        %v1915 = vadd.f32 %v529, %v1850
        %v1916 = vadd.f32 %v530, %v1852
        %v1917 = vadd.f32 %v531, %v1854
        %v1918 = vadd.f32 %v532, %v1858
        %v1919 = vadd.f32 %v533, %v1860
        %v1920 = vadd.f32 %v534, %v1862
        %v1921 = vadd.f32 %v535, %v1864
        %v1922 = vadd.f32 %v536, %v1868
        %v1923 = vadd.f32 %v537, %v1870
        %v1924 = vadd.f32 %v538, %v1872
        %v1925 = vadd.f32 %v539, %v1874
        %v1926 = vadd.f32 %v540, %v1878
        %v1927 = vadd.f32 %v541, %v1880
        %v1928 = vadd.f32 %v542, %v1882
        %v1929 = vadd.f32 %v543, %v1884
        %v1930 = vadd.f32 %v544, %v1888
        %v1931 = vadd.f32 %v545, %v1890
        %v1932 = vadd.f32 %v546, %v1892
        %v1933 = vadd.f32 %v547, %v1894
        %v1934 = vadd.f32 %v548, %v1898
        %v1935 = vadd.f32 %v549, %v1900
        %v1936 = vadd.f32 %v550, %v1902
        %v1937 = vadd.f32 %v551, %v1904
        %1938 = vst [vmem:[#allocation2] sm:$0xff] %v1906
        %1939 = vst [vmem:[#allocation2 + $0x8] sm:$0xff] %v1907
        %1940 = vst [vmem:[#allocation2 + $0x10] sm:$0xff] %v1908
        %1941 = vst [vmem:[#allocation2 + $0x18] sm:$0xff] %v1909
        %1942 = vst [vmem:[#allocation2 + $0x20] sm:$0xff] %v1910
        %1943 = vst [vmem:[#allocation2 + $0x28] sm:$0xff] %v1911
        %1944 = vst [vmem:[#allocation2 + $0x30] sm:$0xff] %v1912
        %1945 = vst [vmem:[#allocation2 + $0x38] sm:$0xff] %v1913
        %1946 = vst [vmem:[#allocation2 + $0x40] sm:$0xff] %v1914
        %1947 = vst [vmem:[#allocation2 + $0x48] sm:$0xff] %v1915
        %1948 = vst [vmem:[#allocation2 + $0x50] sm:$0xff] %v1916
        %1949 = vst [vmem:[#allocation2 + $0x58] sm:$0xff] %v1917
        %1950 = vst [vmem:[#allocation2 + $0x60] sm:$0xff] %v1918
        %1951 = vst [vmem:[#allocation2 + $0x68] sm:$0xff] %v1919
        %1952 = vst [vmem:[#allocation2 + $0x70] sm:$0xff] %v1920
        %1953 = vst [vmem:[#allocation2 + $0x78] sm:$0xff] %v1921
        %1954 = vst [vmem:[#allocation2 + $0x80] sm:$0xff] %v1922
        %1955 = vst [vmem:[#allocation2 + $0x88] sm:$0xff] %v1923
        %1956 = vst [vmem:[#allocation2 + $0x90] sm:$0xff] %v1924
        %1957 = vst [vmem:[#allocation2 + $0x98] sm:$0xff] %v1925
        %1958 = vst [vmem:[#allocation2 + $0xa0] sm:$0xff] %v1926
        %1959 = vst [vmem:[#allocation2 + $0xa8] sm:$0xff] %v1927
        %1960 = vst [vmem:[#allocation2 + $0xb0] sm:$0xff] %v1928
        %1961 = vst [vmem:[#allocation2 + $0xb8] sm:$0xff] %v1929
        %1962 = vst [vmem:[#allocation2 + $0xc0] sm:$0xff] %v1930
        %1963 = vst [vmem:[#allocation2 + $0xc8] sm:$0xff] %v1931
        %1964 = vst [vmem:[#allocation2 + $0xd0] sm:$0xff] %v1932
        %1965 = vst [vmem:[#allocation2 + $0xd8] sm:$0xff] %v1933
        %1966 = vst [vmem:[#allocation2 + $0xe0] sm:$0xff] %v1934
        %1967 = vst [vmem:[#allocation2 + $0xe8] sm:$0xff] %v1935
        %1968 = vst [vmem:[#allocation2 + $0xf0] sm:$0xff] %v1936
        %1969 = vst [vmem:[#allocation2 + $0xf8] sm:$0xff] %v1937
        %p1970 = scmp.eq.s32.totalorder %s24, 1
        // Predicated region
        $region68: #{ffn_forward.1} parent=58 // pred_check
          %p1971 = pneg %p1970
        $region69: #{ffn_forward.1} parent=58 // pred_check_branch
          %1973 = sbr.rel (%p1971) target = $region71
        $region70: #{ffn_forward.1} parent=58 // pred_region
          %v1974 = vld [vmem:[#allocation2] sm:$0xff]
          %v1975 = vld [vmem:[#allocation2 + $0x8] sm:$0xff]
          %v1976 = vld [vmem:[#allocation2 + $0x10] sm:$0xff]
          %v1977 = vld [vmem:[#allocation2 + $0x18] sm:$0xff]
          %v1978 = vld [vmem:[#allocation2 + $0x20] sm:$0xff]
          %v1979 = vld [vmem:[#allocation2 + $0x28] sm:$0xff]
          %v1980 = vld [vmem:[#allocation2 + $0x30] sm:$0xff]
          %v1981 = vld [vmem:[#allocation2 + $0x38] sm:$0xff]
          %v1982 = vld [vmem:[#allocation2 + $0x40] sm:$0xff]
          %v1983 = vld [vmem:[#allocation2 + $0x48] sm:$0xff]
          %v1984 = vld [vmem:[#allocation2 + $0x50] sm:$0xff]
          %v1985 = vld [vmem:[#allocation2 + $0x58] sm:$0xff]
          %v1986 = vld [vmem:[#allocation2 + $0x60] sm:$0xff]
          %v1987 = vld [vmem:[#allocation2 + $0x68] sm:$0xff]
          %v1988 = vld [vmem:[#allocation2 + $0x70] sm:$0xff]
          %v1989 = vld [vmem:[#allocation2 + $0x78] sm:$0xff]
          %v1990 = vld [vmem:[#allocation2 + $0x80] sm:$0xff]
          %v1991 = vld [vmem:[#allocation2 + $0x88] sm:$0xff]
          %v1992 = vld [vmem:[#allocation2 + $0x90] sm:$0xff]
          %v1993 = vld [vmem:[#allocation2 + $0x98] sm:$0xff]
          %v1994 = vld [vmem:[#allocation2 + $0xa0] sm:$0xff]
          %v1995 = vld [vmem:[#allocation2 + $0xa8] sm:$0xff]
          %v1996 = vld [vmem:[#allocation2 + $0xb0] sm:$0xff]
          %v1997 = vld [vmem:[#allocation2 + $0xb8] sm:$0xff]
          %v1998 = vld [vmem:[#allocation2 + $0xc0] sm:$0xff]
          %v1999 = vld [vmem:[#allocation2 + $0xc8] sm:$0xff]
          %v2000 = vld [vmem:[#allocation2 + $0xd0] sm:$0xff]
          %v2001 = vld [vmem:[#allocation2 + $0xd8] sm:$0xff]
          %v2002 = vld [vmem:[#allocation2 + $0xe0] sm:$0xff]
          %v2003 = vld [vmem:[#allocation2 + $0xe8] sm:$0xff]
          %v2004 = vld [vmem:[#allocation2 + $0xf0] sm:$0xff]
          %v2005 = vld [vmem:[#allocation2 + $0xf8] sm:$0xff]
          %v2006 = vld [vmem:[%s4] sm:$0x3]
          %v2008 = vlaneseq
          %v2009 = vshrl.u32 %v2008, 7
          %v2010 = vsub.s32 0, %v2009
          %v2011 = vrot.slane %v2006, %v2010
          %v2012 = vlaneseq
          %v2013 = vshrl.u32 %v2012, 7
          %v2014 = vsub.s32 1, %v2013
          %v2015 = vrot.slane %v2006, %v2014
          %v2018 = vadd.f32 %v1974, %v2011
          %v2019 = vadd.f32 %v1975, %v2015
          %v2020 = vadd.f32 %v1976, %v2011
          %v2021 = vadd.f32 %v1977, %v2015
          %v2022 = vadd.f32 %v1978, %v2011
          %v2023 = vadd.f32 %v1979, %v2015
          %v2024 = vadd.f32 %v1980, %v2011
          %v2025 = vadd.f32 %v1981, %v2015
          %v2026 = vadd.f32 %v1982, %v2011
          %v2027 = vadd.f32 %v1983, %v2015
          %v2028 = vadd.f32 %v1984, %v2011
          %v2029 = vadd.f32 %v1985, %v2015
          %v2030 = vadd.f32 %v1986, %v2011
          %v2031 = vadd.f32 %v1987, %v2015
          %v2032 = vadd.f32 %v1988, %v2011
          %v2033 = vadd.f32 %v1989, %v2015
          %v2034 = vadd.f32 %v1990, %v2011
          %v2035 = vadd.f32 %v1991, %v2015
          %v2036 = vadd.f32 %v1992, %v2011
          %v2037 = vadd.f32 %v1993, %v2015
          %v2038 = vadd.f32 %v1994, %v2011
          %v2039 = vadd.f32 %v1995, %v2015
          %v2040 = vadd.f32 %v1996, %v2011
          %v2041 = vadd.f32 %v1997, %v2015
          %v2042 = vadd.f32 %v1998, %v2011
          %v2043 = vadd.f32 %v1999, %v2015
          %v2044 = vadd.f32 %v2000, %v2011
          %v2045 = vadd.f32 %v2001, %v2015
          %v2046 = vadd.f32 %v2002, %v2011
          %v2047 = vadd.f32 %v2003, %v2015
          %v2048 = vadd.f32 %v2004, %v2011
          %v2049 = vadd.f32 %v2005, %v2015
          %v2050 = vadd.f32 %v2018, %v452
          %v2051 = vadd.f32 %v2019, %v453
          %v2052 = vadd.f32 %v2020, %v454
          %v2053 = vadd.f32 %v2021, %v455
          %v2054 = vadd.f32 %v2022, %v456
          %v2055 = vadd.f32 %v2023, %v457
          %v2056 = vadd.f32 %v2024, %v458
          %v2057 = vadd.f32 %v2025, %v459
          %v2058 = vadd.f32 %v2026, %v460
          %v2059 = vadd.f32 %v2027, %v461
          %v2060 = vadd.f32 %v2028, %v462
          %v2061 = vadd.f32 %v2029, %v463
          %v2062 = vadd.f32 %v2030, %v464
          %v2063 = vadd.f32 %v2031, %v465
          %v2064 = vadd.f32 %v2032, %v466
          %v2065 = vadd.f32 %v2033, %v467
          %v2066 = vadd.f32 %v2034, %v468
          %v2067 = vadd.f32 %v2035, %v469
          %v2068 = vadd.f32 %v2036, %v470
          %v2069 = vadd.f32 %v2037, %v471
          %v2070 = vadd.f32 %v2038, %v472
          %v2071 = vadd.f32 %v2039, %v473
          %v2072 = vadd.f32 %v2040, %v474
          %v2073 = vadd.f32 %v2041, %v475
          %v2074 = vadd.f32 %v2042, %v476
          %v2075 = vadd.f32 %v2043, %v477
          %v2076 = vadd.f32 %v2044, %v478
          %v2077 = vadd.f32 %v2045, %v479
          %v2078 = vadd.f32 %v2046, %v480
          %v2079 = vadd.f32 %v2047, %v481
          %v2080 = vadd.f32 %v2048, %v482
          %v2081 = vadd.f32 %v2049, %v483
          %2082 = vst [vmem:[%s430] sm:$0xff] %v2050
          %2083 = vst [vmem:[%s430 + $0x8] sm:$0xff] %v2051
          %2084 = vst [vmem:[%s430 + $0x10] sm:$0xff] %v2052
          %2085 = vst [vmem:[%s430 + $0x18] sm:$0xff] %v2053
          %2086 = vst [vmem:[%s430 + $0x20] sm:$0xff] %v2054
          %2087 = vst [vmem:[%s430 + $0x28] sm:$0xff] %v2055
          %2088 = vst [vmem:[%s430 + $0x30] sm:$0xff] %v2056
          %2089 = vst [vmem:[%s430 + $0x38] sm:$0xff] %v2057
          %2090 = vst [vmem:[%s430 + $0x40] sm:$0xff] %v2058
          %2091 = vst [vmem:[%s430 + $0x48] sm:$0xff] %v2059
          %2092 = vst [vmem:[%s430 + $0x50] sm:$0xff] %v2060
          %2093 = vst [vmem:[%s430 + $0x58] sm:$0xff] %v2061
          %2094 = vst [vmem:[%s430 + $0x60] sm:$0xff] %v2062
          %2095 = vst [vmem:[%s430 + $0x68] sm:$0xff] %v2063
          %2096 = vst [vmem:[%s430 + $0x70] sm:$0xff] %v2064
          %2097 = vst [vmem:[%s430 + $0x78] sm:$0xff] %v2065
          %2098 = vst [vmem:[%s430 + $0x80] sm:$0xff] %v2066
          %2099 = vst [vmem:[%s430 + $0x88] sm:$0xff] %v2067
          %2100 = vst [vmem:[%s430 + $0x90] sm:$0xff] %v2068
          %2101 = vst [vmem:[%s430 + $0x98] sm:$0xff] %v2069
          %2102 = vst [vmem:[%s430 + $0xa0] sm:$0xff] %v2070
          %2103 = vst [vmem:[%s430 + $0xa8] sm:$0xff] %v2071
          %2104 = vst [vmem:[%s430 + $0xb0] sm:$0xff] %v2072
          %2105 = vst [vmem:[%s430 + $0xb8] sm:$0xff] %v2073
          %2106 = vst [vmem:[%s430 + $0xc0] sm:$0xff] %v2074
          %2107 = vst [vmem:[%s430 + $0xc8] sm:$0xff] %v2075
          %2108 = vst [vmem:[%s430 + $0xd0] sm:$0xff] %v2076
          %2109 = vst [vmem:[%s430 + $0xd8] sm:$0xff] %v2077
          %2110 = vst [vmem:[%s430 + $0xe0] sm:$0xff] %v2078
          %2111 = vst [vmem:[%s430 + $0xe8] sm:$0xff] %v2079
          %2112 = vst [vmem:[%s430 + $0xf0] sm:$0xff] %v2080
          %2113 = vst [vmem:[%s430 + $0xf8] sm:$0xff] %v2081
        $region71: #{ffn_forward.1} parent=58 // pred_fallthru
          _
        %s2114 = sand.u32 %s164, 1
        %s2115 = scalar_lea.sflag [#allocation5], %s2114
        %s2116 = sand.u32 %s164, 1
        %s2117 = smul.addr %s2116, 256
        %s2118 = scalar_lea.vmem [#allocation4], %s2117
        // Predicated region
        $region72: #{ffn_forward.1} parent=58 // pred_check
          %p2119 = pneg %p174
        $region73: #{ffn_forward.1} parent=58 // pred_check_branch
          %2121 = sbr.rel (%p2119) target = $region75
        $region74: #{ffn_forward.1} parent=58 // pred_region
          %s2122 = smul.u32 16, %s23
          %s2124 = ssub.s32 4096, 4096
          %2125 = vsyncadd %s2115, %s2124
          %s2126 = smul.addr %s2122, 2
          %s2127 = smul.addr %s2126, 128
          %s2128 = scalar_lea.hbm %s5, %s2127
          %s2129 = sshll.u32 %s2118, 4
          %s2130 = int_to_ptr.vmem [resolvable:$true] %s2129
          %2135 = dma.vmem_to_hbm [thread:$0]  %s2130, 4096, %s2128, %s2115, 256, 256, 16
        $region75: #{ffn_forward.1} parent=58 // pred_fallthru
          _
      $region59: #{ffn_forward.1} parent=5 // pred_fallthru
        _
      %p2136 = scmp.le.s32.totalorder 2, %s14
      // Predicated region
      $region76: #{ffn_forward.1} parent=5 // pred_check
        %p2137 = pneg %p2136
      $region77: #{ffn_forward.1} parent=5 // pred_check_branch
        %2139 = sbr.rel (%p2137) target = $region79
      $region78: #{ffn_forward.1} parent=5 // pred_region
        %s2140 = ssub.s32 %s14, 2
        // Predicated region
        $region80: #{ffn_forward.1} parent=78 // pred_check
          %p2141 = pneg %p180
        $region81: #{ffn_forward.1} parent=78 // pred_check_branch
          %2143 = sbr.rel (%p2141) target = $region83
        $region82: #{ffn_forward.1} parent=78 // pred_region
          %s2144 = sand.u32 %s165, 1
          %s2145 = scalar_lea.sflag [#allocation5], %s2144
          %s2146 = sand.u32 %s165, 1
          %s2147 = smul.addr %s2146, 256
          %s2148 = scalar_lea.vmem [#allocation4], %s2147
          %2149 = dma.done %s2145, 4096
        $region83: #{ffn_forward.1} parent=78 // pred_fallthru
          _
      $region79: #{ffn_forward.1} parent=5 // pred_fallthru
        _
    $region6: #{ffn_forward.1} parent=1 // loop_footer
      %s18 = sadd.s32 1, %s14
    $region7: #{ffn_forward.1} parent=1 // loop_footer_branch
      %13 = sbr.rel target = $region3
    $region8: #{ffn_forward.1} parent=1 // loop_exit
      _
    %2150 = vsyncpa [#allocation5], 1
    %s2151 = scalar_lea.sflag [#allocation5], 1
    %2152 = vsyncpa %s2151, 1

</llo_original>
